<compile_context>
chip_gen: v7x
topology: tpu7x:2x2x1
jax: 0.10.0
libtpu: 0.0.40
codegen_flags: <defaults>
</compile_context>

<pallas_src>
import functools

import jax
import jax.numpy as jnp
import numpy as np
from jax.experimental import pallas as pl
from jax.experimental.pallas import tpu as pltpu

# ---- model hyper-parameters (small, consistent with the module) -------------
BATCH = 2
CONDITION_SIZE = 8        # sequence length T
HIDDEN_SIZE = 32          # H
HIDDEN_LAYER_DEPTH = 2    # L (number of stacked LSTM layers)
LATENT_LENGTH = 16
OUTPUT_SIZE = 1
MEAN = 0.5                # data mean  (self.mean)
STD = 2.0                 # data std   (self.std)


# -----------------------------------------------------------------------------
# Pallas kernel: whole Decoder forward (normalize -> latent_to_hidden ->
# stacked LSTM -> last-timestep -> hidden_to_output -> denormalize).
# Everything lives in VMEM as whole-array blocks (no grid); time & layer loops
# are statically unrolled.
# -----------------------------------------------------------------------------
def _decoder_kernel(inp_ref, wslab_ref, sslab_ref, out_ref, *, B, T, H, L, Z, O):
    f32 = jnp.float32

    # ---- unpack the per-call input slab (rows: latent, then x^T) ------------
    latent = inp_ref[0:B, 0:Z]                    # (B, Z)
    xT = inp_ref[B:B + T, 0:B]                    # (T, B) time-major condition

    # ---- unpack the small (H-lane) slab --------------------------------------
    w_l2h = sslab_ref[0:Z, :]                     # (Z, H)
    b_l2h = sslab_ref[Z:Z + 1, :]                 # (1, H)
    w_h2o = sslab_ref[Z + 1:Z + 1 + H, :]         # (H, H)  cols >= O are zero
    b_h2o = sslab_ref[Z + 1 + H:Z + 2 + H, :]     # (1, H)  cols >= O are zero

    # ---- row offsets inside the 4H-lane weight slab --------------------------
    r_hh = 0                                      # L*H rows of w_hh
    r_ih = L * H                                  # (L-1)*H rows of w_ih (layers>=1)
    r_ih0 = r_ih + (L - 1) * H                    # 1 row of w_ih for layer 0
    r_b = r_ih0 + 1                               # L rows of combined gate bias

    w_ih0 = wslab_ref[r_ih0:r_ih0 + 1, :]         # (1, 4H)

    # x = (x - mean) / std   and hoisted layer-0 input-gate contributions
    xn = (xT.astype(f32) - MEAN) * (1.0 / STD)    # (T, B)
    gx0 = xn[:, :, None] * w_ih0[None, :, :]      # (T, B, 4H), computed once

    # h = latent_to_hidden(latent); used as h_0 for every LSTM layer
    h0 = (jnp.dot(latent, w_l2h, preferred_element_type=f32) + b_l2h)   # (B, H)

    def lstm_cell(gates, c):
        # whole-vreg EUP activations, slice afterwards (gate order [i, f, g, o])
        sg = jax.nn.sigmoid(gates)                # (B, 4H)
        th = jnp.tanh(gates)                      # (B, 4H)
        i = sg[:, 0 * H:1 * H]
        f = sg[:, 1 * H:2 * H]
        g = th[:, 2 * H:3 * H]
        o = sg[:, 3 * H:4 * H]
        c_new = f * c + i * g
        h_new = o * jnp.tanh(c_new)
        return h_new, c_new

    # stacked LSTM, statically unrolled over layers and time.
    # Layer l, step t only depends on (l, t-1) and (l-1, t)  -> wavefront graph.
    seq = None
    for layer in range(L):
        w_hh = wslab_ref[r_hh + layer * H: r_hh + (layer + 1) * H, :]        # (H, 4H)
        b_g = wslab_ref[r_b + layer: r_b + layer + 1, :]                     # (1, 4H)
        if layer > 0:
            w_ih = wslab_ref[r_ih + (layer - 1) * H: r_ih + layer * H, :]    # (H, 4H)
        h = h0                                                               # h_0
        c = jnp.zeros((B, H), f32)                                           # c_0
        new_seq = []
        for t in range(T):
            if layer == 0:
                gates_x = gx0[t]                                             # (B, 4H)
            else:
                gates_x = jnp.dot(seq[t], w_ih, preferred_element_type=f32)
            gates = gates_x + jnp.dot(h, w_hh, preferred_element_type=f32) + b_g
            h, c = lstm_cell(gates, c)
            new_seq.append(h)
        seq = new_seq

    last = seq[-1]                                                           # (B, H)

    # hidden_to_output (lane-padded weights), then de-normalize
    y = jnp.dot(last, w_h2o, preferred_element_type=f32) + b_h2o             # (B, H)
    out_ref[...] = y[:, 0:O] * STD + MEAN


# -----------------------------------------------------------------------------
# Host-side packing of the 10 logical arrays into 3 lane-dense slabs.
# -----------------------------------------------------------------------------
def _pad_rows(a, mult=8):
    pad = (-a.shape[0]) % mult
    if pad:
        a = jnp.concatenate([a, jnp.zeros((pad,) + a.shape[1:], a.dtype)], axis=0)
    return a


def pack_params(params):
    (w_l2h, b_l2h, w_ih0, w_ih_rest, w_hh, b_gate, w_h2o, b_h2o) = params
    L = w_hh.shape[0]
    H = w_l2h.shape[1]
    Z = w_l2h.shape[0]
    O = w_h2o.shape[1]
    H4 = 4 * H

    # 4H-lane weight slab: [w_hh | w_ih(layers>=1) | w_ih0 | b_gate]
    slab_w = jnp.concatenate(
        [w_hh.reshape(L * H, H4),
         w_ih_rest.reshape((L - 1) * H, H4),
         w_ih0.reshape(1, H4),
         b_gate.reshape(L, H4)], axis=0).astype(jnp.float32)
    slab_w = _pad_rows(slab_w)

    # H-lane slab: [w_l2h | b_l2h | w_h2o (lane-padded) | b_h2o (lane-padded)]
    w_h2o_pad = jnp.zeros((H, H), jnp.float32).at[:, :O].set(w_h2o)
    b_h2o_pad = jnp.zeros((1, H), jnp.float32).at[:, :O].set(b_h2o)
    slab_s = jnp.concatenate(
        [w_l2h, b_l2h.reshape(1, H), w_h2o_pad, b_h2o_pad], axis=0).astype(jnp.float32)
    slab_s = _pad_rows(slab_s)
    return slab_w, slab_s


def pack_inputs(latent, x):
    B, Z = latent.shape
    T = x.shape[1]
    lane = max(Z, B)
    inp = jnp.zeros((B + T, lane), jnp.float32)
    inp = inp.at[:B, :Z].set(latent.astype(jnp.float32))
    inp = inp.at[B:B + T, :B].set(x.astype(jnp.float32).T)   # time-major x
    return _pad_rows(inp)


@jax.jit
def decoder_forward(latent, x, params):
    (w_l2h, _b_l2h, _w_ih0, _w_ih_rest, w_hh, _b_gate, w_h2o, _b_h2o) = params
    B, Z = latent.shape
    T = x.shape[1]
    H = w_l2h.shape[1]
    L = w_hh.shape[0]
    O = w_h2o.shape[1]

    slab_w, slab_s = pack_params(params)
    inp = pack_inputs(latent, x)

    kernel = functools.partial(_decoder_kernel, B=B, T=T, H=H, L=L, Z=Z, O=O)
    vmem = pl.BlockSpec(memory_space=pltpu.MemorySpace.VMEM)
    return pl.pallas_call(
        kernel,
        out_shape=jax.ShapeDtypeStruct((B, O), jnp.float32),
        in_specs=[vmem, vmem, vmem],
        out_specs=vmem,
    )(inp, slab_w, slab_s)


# -----------------------------------------------------------------------------
# Pure-JAX reference (same math) used to verify the kernel.
# -----------------------------------------------------------------------------
def decoder_reference(latent, x, params):
    (w_l2h, b_l2h, w_ih0, w_ih_rest, w_hh, b_gate, w_h2o, b_h2o) = params
    B, T = x.shape
    H = w_l2h.shape[1]
    L = w_hh.shape[0]
    xn = (x - MEAN) / STD
    h0 = latent @ w_l2h + b_l2h

    seq = [None] * T
    for layer in range(L):
        h = h0
        c = jnp.zeros((B, H), jnp.float32)
        new_seq = []
        for t in range(T):
            if layer == 0:
                gates_x = xn[:, t][:, None] * w_ih0
            else:
                gates_x = seq[t] @ w_ih_rest[layer - 1]
            gates = gates_x + h @ w_hh[layer] + b_gate[layer]
            i = jax.nn.sigmoid(gates[:, 0 * H:1 * H])
            f = jax.nn.sigmoid(gates[:, 1 * H:2 * H])
            g = jnp.tanh(gates[:, 2 * H:3 * H])
            o = jax.nn.sigmoid(gates[:, 3 * H:4 * H])
            c = f * c + i * g
            h = o * jnp.tanh(c)
            new_seq.append(h)
        seq = new_seq
    y = seq[-1] @ w_h2o + b_h2o
    return y * STD + MEAN


# -----------------------------------------------------------------------------
# Deterministic parameter construction (shapes follow the PyTorch module).
# -----------------------------------------------------------------------------
def init_params(key):
    H, L, Z, O = HIDDEN_SIZE, HIDDEN_LAYER_DEPTH, LATENT_LENGTH, OUTPUT_SIZE
    keys = jax.random.split(key, 10)

    def xavier(k, fan_in, fan_out, shape):
        lim = float(np.sqrt(6.0 / (fan_in + fan_out)))
        return jax.random.uniform(k, shape, jnp.float32, -lim, lim)

    def lstm_u(k, shape):
        lim = 1.0 / float(np.sqrt(H))
        return jax.random.uniform(k, shape, jnp.float32, -lim, lim)

    # latent_to_hidden: nn.Linear(Z, H)  -> stored pre-transposed (Z, H)
    w_l2h = xavier(keys[0], Z, H, (Z, H))
    b_l2h = lstm_u(keys[1], (1, H))

    # LSTM layer 0: weight_ih_l0 (4H, 1) -> transposed (1, 4H)
    w_ih0 = lstm_u(keys[2], (1, 4 * H))
    # LSTM layers 1..L-1: weight_ih (4H, H) -> transposed (H, 4H), stacked
    w_ih_rest = lstm_u(keys[3], (L - 1, H, 4 * H))
    # weight_hh for all layers: (4H, H) -> transposed (H, 4H), stacked
    w_hh = lstm_u(keys[4], (L, H, 4 * H))
    # combined bias b_ih + b_hh per layer: (L, 1, 4H)
    b_gate = lstm_u(keys[5], (L, 1, 4 * H)) + lstm_u(keys[6], (L, 1, 4 * H))

    # hidden_to_output: nn.Linear(H, O) -> transposed (H, O)
    w_h2o = xavier(keys[7], H, O, (H, O))
    b_h2o = lstm_u(keys[8], (1, O))

    return (w_l2h, b_l2h, w_ih0, w_ih_rest, w_hh, b_gate, w_h2o, b_h2o)


if __name__ == "__main__":
    key = jax.random.PRNGKey(0)
    k_lat, k_x, k_p = jax.random.split(key, 3)

    latent = jax.random.normal(k_lat, (BATCH, LATENT_LENGTH), jnp.float32)
    x = jax.random.normal(k_x, (BATCH, CONDITION_SIZE), jnp.float32)
    params = init_params(k_p)

    out = decoder_forward(latent, x, params)
    out = jax.block_until_ready(out)

    ref = jax.block_until_ready(decoder_reference(latent, x, params))
    np.testing.assert_allclose(np.asarray(out), np.asarray(ref),
                               rtol=1e-4, atol=1e-4)
    assert out.shape == (BATCH, OUTPUT_SIZE)
    print("KERNEL_OK")
</pallas_src>

<mosaic_0001>
module attributes {stable_mosaic.version = 11 : i64} {
  func.func @_decoder_kernel(%arg0: memref<16x16xf32, #tpu.memory_space<vmem>>, %arg1: memref<104x128xf32, #tpu.memory_space<vmem>>, %arg2: memref<56x32xf32, #tpu.memory_space<vmem>>, %arg3: memref<2x1xf32, #tpu.memory_space<vmem>>) attributes {dimension_semantics = [], scalar_prefetch = 0 : i64, scratch_operands = 0 : i64, tpu.core_type = #tpu.core_type<tc>} {
    %c0 = arith.constant 0 : index
    %c0_0 = arith.constant 0 : index
    %0 = vector.load %arg0[%c0, %c0_0] : memref<16x16xf32, #tpu.memory_space<vmem>>, vector<2x16xf32>
    %c2 = arith.constant 2 : index
    %c0_1 = arith.constant 0 : index
    %1 = vector.load %arg0[%c2, %c0_1] : memref<16x16xf32, #tpu.memory_space<vmem>>, vector<8x2xf32>
    %c0_2 = arith.constant 0 : index
    %c0_3 = arith.constant 0 : index
    %2 = vector.load %arg2[%c0_2, %c0_3] : memref<56x32xf32, #tpu.memory_space<vmem>>, vector<16x32xf32>
    %c16 = arith.constant 16 : index
    %c0_4 = arith.constant 0 : index
    %3 = vector.load %arg2[%c16, %c0_4] : memref<56x32xf32, #tpu.memory_space<vmem>>, vector<1x32xf32>
    %c17 = arith.constant 17 : index
    %c0_5 = arith.constant 0 : index
    %4 = vector.load %arg2[%c17, %c0_5] : memref<56x32xf32, #tpu.memory_space<vmem>>, vector<32x32xf32>
    %c49 = arith.constant 49 : index
    %c0_6 = arith.constant 0 : index
    %5 = vector.load %arg2[%c49, %c0_6] : memref<56x32xf32, #tpu.memory_space<vmem>>, vector<1x32xf32>
    %c96 = arith.constant 96 : index
    %c0_7 = arith.constant 0 : index
    %6 = vector.load %arg1[%c96, %c0_7] : memref<104x128xf32, #tpu.memory_space<vmem>>, vector<1x128xf32>
    %cst = arith.constant 5.000000e-01 : f32
    %7 = vector.broadcast %cst : f32 to vector<8x2xf32>
    %8 = arith.subf %1, %7 : vector<8x2xf32>
    %cst_8 = arith.constant 5.000000e-01 : f32
    %9 = vector.broadcast %cst_8 : f32 to vector<8x2xf32>
    %10 = arith.mulf %8, %9 : vector<8x2xf32>
    %11 = vector.shape_cast %10 : vector<8x2xf32> to vector<8x2x1xf32>
    %12 = vector.shape_cast %6 : vector<1x128xf32> to vector<1x1x128xf32>
    %13 = vector.broadcast %11 : vector<8x2x1xf32> to vector<8x2x128xf32>
    %14 = vector.broadcast %12 : vector<1x1x128xf32> to vector<8x2x128xf32>
    %15 = arith.mulf %13, %14 : vector<8x2x128xf32>
    %cst_9 = arith.constant dense<0.000000e+00> : vector<2x32xf32>
    %16 = tpu.matmul %0, %2, %cst_9 {dimension_numbers = #tpu.dot_dimension_numbers<[1], [0], [0], [1], [0, 0, 1, 1], [], []>} : vector<2x16xf32>, vector<16x32xf32>, vector<2x32xf32> -> vector<2x32xf32>
    %17 = vector.broadcast %3 : vector<1x32xf32> to vector<2x32xf32>
    %18 = arith.addf %16, %17 : vector<2x32xf32>
    %c0_10 = arith.constant 0 : index
    %c0_11 = arith.constant 0 : index
    %19 = vector.load %arg1[%c0_10, %c0_11] : memref<104x128xf32, #tpu.memory_space<vmem>>, vector<32x128xf32>
    %c97 = arith.constant 97 : index
    %c0_12 = arith.constant 0 : index
    %20 = vector.load %arg1[%c97, %c0_12] : memref<104x128xf32, #tpu.memory_space<vmem>>, vector<1x128xf32>
    %cst_13 = arith.constant 0.000000e+00 : f32
    %21 = vector.broadcast %cst_13 : f32 to vector<2x32xf32>
    %22 = vector.extract_strided_slice %15 {offsets = [0, 0, 0], sizes = [1, 2, 128], strides = [1, 1, 1]} : vector<8x2x128xf32> to vector<1x2x128xf32>
    %23 = vector.shape_cast %22 : vector<1x2x128xf32> to vector<2x128xf32>
    %cst_14 = arith.constant dense<0.000000e+00> : vector<2x128xf32>
    %24 = tpu.matmul %18, %19, %cst_14 {dimension_numbers = #tpu.dot_dimension_numbers<[1], [0], [0], [1], [0, 0, 1, 1], [], []>} : vector<2x32xf32>, vector<32x128xf32>, vector<2x128xf32> -> vector<2x128xf32>
    %25 = arith.addf %23, %24 : vector<2x128xf32>
    %26 = vector.broadcast %20 : vector<1x128xf32> to vector<2x128xf32>
    %27 = arith.addf %25, %26 : vector<2x128xf32>
    %28 = arith.negf %27 : vector<2x128xf32>
    %29 = math.exp %28 : vector<2x128xf32>
    %cst_15 = arith.constant 1.000000e+00 : f32
    %30 = vector.broadcast %cst_15 : f32 to vector<2x128xf32>
    %31 = arith.addf %30, %29 : vector<2x128xf32>
    %32 = arith.divf %30, %31 : vector<2x128xf32>
    %33 = math.tanh %27 : vector<2x128xf32>
    %34 = vector.extract_strided_slice %32 {offsets = [0, 0], sizes = [2, 32], strides = [1, 1]} : vector<2x128xf32> to vector<2x32xf32>
    %35 = vector.extract_strided_slice %32 {offsets = [0, 32], sizes = [2, 32], strides = [1, 1]} : vector<2x128xf32> to vector<2x32xf32>
    %36 = vector.extract_strided_slice %33 {offsets = [0, 64], sizes = [2, 32], strides = [1, 1]} : vector<2x128xf32> to vector<2x32xf32>
    %37 = vector.extract_strided_slice %32 {offsets = [0, 96], sizes = [2, 32], strides = [1, 1]} : vector<2x128xf32> to vector<2x32xf32>
    %38 = arith.mulf %35, %21 : vector<2x32xf32>
    %39 = arith.mulf %34, %36 : vector<2x32xf32>
    %40 = arith.addf %38, %39 : vector<2x32xf32>
    %41 = math.tanh %40 : vector<2x32xf32>
    %42 = arith.mulf %37, %41 : vector<2x32xf32>
    %43 = vector.extract_strided_slice %15 {offsets = [1, 0, 0], sizes = [1, 2, 128], strides = [1, 1, 1]} : vector<8x2x128xf32> to vector<1x2x128xf32>
    %44 = vector.shape_cast %43 : vector<1x2x128xf32> to vector<2x128xf32>
    %cst_16 = arith.constant dense<0.000000e+00> : vector<2x128xf32>
    %45 = tpu.matmul %42, %19, %cst_16 {dimension_numbers = #tpu.dot_dimension_numbers<[1], [0], [0], [1], [0, 0, 1, 1], [], []>} : vector<2x32xf32>, vector<32x128xf32>, vector<2x128xf32> -> vector<2x128xf32>
    %46 = arith.addf %44, %45 : vector<2x128xf32>
    %47 = vector.broadcast %20 : vector<1x128xf32> to vector<2x128xf32>
    %48 = arith.addf %46, %47 : vector<2x128xf32>
    %49 = arith.negf %48 : vector<2x128xf32>
    %50 = math.exp %49 : vector<2x128xf32>
    %cst_17 = arith.constant 1.000000e+00 : f32
    %51 = vector.broadcast %cst_17 : f32 to vector<2x128xf32>
    %52 = arith.addf %51, %50 : vector<2x128xf32>
    %53 = arith.divf %51, %52 : vector<2x128xf32>
    %54 = math.tanh %48 : vector<2x128xf32>
    %55 = vector.extract_strided_slice %53 {offsets = [0, 0], sizes = [2, 32], strides = [1, 1]} : vector<2x128xf32> to vector<2x32xf32>
    %56 = vector.extract_strided_slice %53 {offsets = [0, 32], sizes = [2, 32], strides = [1, 1]} : vector<2x128xf32> to vector<2x32xf32>
    %57 = vector.extract_strided_slice %54 {offsets = [0, 64], sizes = [2, 32], strides = [1, 1]} : vector<2x128xf32> to vector<2x32xf32>
    %58 = vector.extract_strided_slice %53 {offsets = [0, 96], sizes = [2, 32], strides = [1, 1]} : vector<2x128xf32> to vector<2x32xf32>
    %59 = arith.mulf %56, %40 : vector<2x32xf32>
    %60 = arith.mulf %55, %57 : vector<2x32xf32>
    %61 = arith.addf %59, %60 : vector<2x32xf32>
    %62 = math.tanh %61 : vector<2x32xf32>
    %63 = arith.mulf %58, %62 : vector<2x32xf32>
    %64 = vector.extract_strided_slice %15 {offsets = [2, 0, 0], sizes = [1, 2, 128], strides = [1, 1, 1]} : vector<8x2x128xf32> to vector<1x2x128xf32>
    %65 = vector.shape_cast %64 : vector<1x2x128xf32> to vector<2x128xf32>
    %cst_18 = arith.constant dense<0.000000e+00> : vector<2x128xf32>
    %66 = tpu.matmul %63, %19, %cst_18 {dimension_numbers = #tpu.dot_dimension_numbers<[1], [0], [0], [1], [0, 0, 1, 1], [], []>} : vector<2x32xf32>, vector<32x128xf32>, vector<2x128xf32> -> vector<2x128xf32>
    %67 = arith.addf %65, %66 : vector<2x128xf32>
    %68 = vector.broadcast %20 : vector<1x128xf32> to vector<2x128xf32>
    %69 = arith.addf %67, %68 : vector<2x128xf32>
    %70 = arith.negf %69 : vector<2x128xf32>
    %71 = math.exp %70 : vector<2x128xf32>
    %cst_19 = arith.constant 1.000000e+00 : f32
    %72 = vector.broadcast %cst_19 : f32 to vector<2x128xf32>
    %73 = arith.addf %72, %71 : vector<2x128xf32>
    %74 = arith.divf %72, %73 : vector<2x128xf32>
    %75 = math.tanh %69 : vector<2x128xf32>
    %76 = vector.extract_strided_slice %74 {offsets = [0, 0], sizes = [2, 32], strides = [1, 1]} : vector<2x128xf32> to vector<2x32xf32>
    %77 = vector.extract_strided_slice %74 {offsets = [0, 32], sizes = [2, 32], strides = [1, 1]} : vector<2x128xf32> to vector<2x32xf32>
    %78 = vector.extract_strided_slice %75 {offsets = [0, 64], sizes = [2, 32], strides = [1, 1]} : vector<2x128xf32> to vector<2x32xf32>
    %79 = vector.extract_strided_slice %74 {offsets = [0, 96], sizes = [2, 32], strides = [1, 1]} : vector<2x128xf32> to vector<2x32xf32>
    %80 = arith.mulf %77, %61 : vector<2x32xf32>
    %81 = arith.mulf %76, %78 : vector<2x32xf32>
    %82 = arith.addf %80, %81 : vector<2x32xf32>
    %83 = math.tanh %82 : vector<2x32xf32>
    %84 = arith.mulf %79, %83 : vector<2x32xf32>
    %85 = vector.extract_strided_slice %15 {offsets = [3, 0, 0], sizes = [1, 2, 128], strides = [1, 1, 1]} : vector<8x2x128xf32> to vector<1x2x128xf32>
    %86 = vector.shape_cast %85 : vector<1x2x128xf32> to vector<2x128xf32>
    %cst_20 = arith.constant dense<0.000000e+00> : vector<2x128xf32>
    %87 = tpu.matmul %84, %19, %cst_20 {dimension_numbers = #tpu.dot_dimension_numbers<[1], [0], [0], [1], [0, 0, 1, 1], [], []>} : vector<2x32xf32>, vector<32x128xf32>, vector<2x128xf32> -> vector<2x128xf32>
    %88 = arith.addf %86, %87 : vector<2x128xf32>
    %89 = vector.broadcast %20 : vector<1x128xf32> to vector<2x128xf32>
    %90 = arith.addf %88, %89 : vector<2x128xf32>
    %91 = arith.negf %90 : vector<2x128xf32>
    %92 = math.exp %91 : vector<2x128xf32>
    %cst_21 = arith.constant 1.000000e+00 : f32
    %93 = vector.broadcast %cst_21 : f32 to vector<2x128xf32>
    %94 = arith.addf %93, %92 : vector<2x128xf32>
    %95 = arith.divf %93, %94 : vector<2x128xf32>
    %96 = math.tanh %90 : vector<2x128xf32>
    %97 = vector.extract_strided_slice %95 {offsets = [0, 0], sizes = [2, 32], strides = [1, 1]} : vector<2x128xf32> to vector<2x32xf32>
    %98 = vector.extract_strided_slice %95 {offsets = [0, 32], sizes = [2, 32], strides = [1, 1]} : vector<2x128xf32> to vector<2x32xf32>
    %99 = vector.extract_strided_slice %96 {offsets = [0, 64], sizes = [2, 32], strides = [1, 1]} : vector<2x128xf32> to vector<2x32xf32>
    %100 = vector.extract_strided_slice %95 {offsets = [0, 96], sizes = [2, 32], strides = [1, 1]} : vector<2x128xf32> to vector<2x32xf32>
    %101 = arith.mulf %98, %82 : vector<2x32xf32>
    %102 = arith.mulf %97, %99 : vector<2x32xf32>
    %103 = arith.addf %101, %102 : vector<2x32xf32>
    %104 = math.tanh %103 : vector<2x32xf32>
    %105 = arith.mulf %100, %104 : vector<2x32xf32>
    %106 = vector.extract_strided_slice %15 {offsets = [4, 0, 0], sizes = [1, 2, 128], strides = [1, 1, 1]} : vector<8x2x128xf32> to vector<1x2x128xf32>
    %107 = vector.shape_cast %106 : vector<1x2x128xf32> to vector<2x128xf32>
    %cst_22 = arith.constant dense<0.000000e+00> : vector<2x128xf32>
    %108 = tpu.matmul %105, %19, %cst_22 {dimension_numbers = #tpu.dot_dimension_numbers<[1], [0], [0], [1], [0, 0, 1, 1], [], []>} : vector<2x32xf32>, vector<32x128xf32>, vector<2x128xf32> -> vector<2x128xf32>
    %109 = arith.addf %107, %108 : vector<2x128xf32>
    %110 = vector.broadcast %20 : vector<1x128xf32> to vector<2x128xf32>
    %111 = arith.addf %109, %110 : vector<2x128xf32>
    %112 = arith.negf %111 : vector<2x128xf32>
    %113 = math.exp %112 : vector<2x128xf32>
    %cst_23 = arith.constant 1.000000e+00 : f32
    %114 = vector.broadcast %cst_23 : f32 to vector<2x128xf32>
    %115 = arith.addf %114, %113 : vector<2x128xf32>
    %116 = arith.divf %114, %115 : vector<2x128xf32>
    %117 = math.tanh %111 : vector<2x128xf32>
    %118 = vector.extract_strided_slice %116 {offsets = [0, 0], sizes = [2, 32], strides = [1, 1]} : vector<2x128xf32> to vector<2x32xf32>
    %119 = vector.extract_strided_slice %116 {offsets = [0, 32], sizes = [2, 32], strides = [1, 1]} : vector<2x128xf32> to vector<2x32xf32>
    %120 = vector.extract_strided_slice %117 {offsets = [0, 64], sizes = [2, 32], strides = [1, 1]} : vector<2x128xf32> to vector<2x32xf32>
    %121 = vector.extract_strided_slice %116 {offsets = [0, 96], sizes = [2, 32], strides = [1, 1]} : vector<2x128xf32> to vector<2x32xf32>
    %122 = arith.mulf %119, %103 : vector<2x32xf32>
    %123 = arith.mulf %118, %120 : vector<2x32xf32>
    %124 = arith.addf %122, %123 : vector<2x32xf32>
    %125 = math.tanh %124 : vector<2x32xf32>
    %126 = arith.mulf %121, %125 : vector<2x32xf32>
    %127 = vector.extract_strided_slice %15 {offsets = [5, 0, 0], sizes = [1, 2, 128], strides = [1, 1, 1]} : vector<8x2x128xf32> to vector<1x2x128xf32>
    %128 = vector.shape_cast %127 : vector<1x2x128xf32> to vector<2x128xf32>
    %cst_24 = arith.constant dense<0.000000e+00> : vector<2x128xf32>
    %129 = tpu.matmul %126, %19, %cst_24 {dimension_numbers = #tpu.dot_dimension_numbers<[1], [0], [0], [1], [0, 0, 1, 1], [], []>} : vector<2x32xf32>, vector<32x128xf32>, vector<2x128xf32> -> vector<2x128xf32>
    %130 = arith.addf %128, %129 : vector<2x128xf32>
    %131 = vector.broadcast %20 : vector<1x128xf32> to vector<2x128xf32>
    %132 = arith.addf %130, %131 : vector<2x128xf32>
    %133 = arith.negf %132 : vector<2x128xf32>
    %134 = math.exp %133 : vector<2x128xf32>
    %cst_25 = arith.constant 1.000000e+00 : f32
    %135 = vector.broadcast %cst_25 : f32 to vector<2x128xf32>
    %136 = arith.addf %135, %134 : vector<2x128xf32>
    %137 = arith.divf %135, %136 : vector<2x128xf32>
    %138 = math.tanh %132 : vector<2x128xf32>
    %139 = vector.extract_strided_slice %137 {offsets = [0, 0], sizes = [2, 32], strides = [1, 1]} : vector<2x128xf32> to vector<2x32xf32>
    %140 = vector.extract_strided_slice %137 {offsets = [0, 32], sizes = [2, 32], strides = [1, 1]} : vector<2x128xf32> to vector<2x32xf32>
    %141 = vector.extract_strided_slice %138 {offsets = [0, 64], sizes = [2, 32], strides = [1, 1]} : vector<2x128xf32> to vector<2x32xf32>
    %142 = vector.extract_strided_slice %137 {offsets = [0, 96], sizes = [2, 32], strides = [1, 1]} : vector<2x128xf32> to vector<2x32xf32>
    %143 = arith.mulf %140, %124 : vector<2x32xf32>
    %144 = arith.mulf %139, %141 : vector<2x32xf32>
    %145 = arith.addf %143, %144 : vector<2x32xf32>
    %146 = math.tanh %145 : vector<2x32xf32>
    %147 = arith.mulf %142, %146 : vector<2x32xf32>
    %148 = vector.extract_strided_slice %15 {offsets = [6, 0, 0], sizes = [1, 2, 128], strides = [1, 1, 1]} : vector<8x2x128xf32> to vector<1x2x128xf32>
    %149 = vector.shape_cast %148 : vector<1x2x128xf32> to vector<2x128xf32>
    %cst_26 = arith.constant dense<0.000000e+00> : vector<2x128xf32>
    %150 = tpu.matmul %147, %19, %cst_26 {dimension_numbers = #tpu.dot_dimension_numbers<[1], [0], [0], [1], [0, 0, 1, 1], [], []>} : vector<2x32xf32>, vector<32x128xf32>, vector<2x128xf32> -> vector<2x128xf32>
    %151 = arith.addf %149, %150 : vector<2x128xf32>
    %152 = vector.broadcast %20 : vector<1x128xf32> to vector<2x128xf32>
    %153 = arith.addf %151, %152 : vector<2x128xf32>
    %154 = arith.negf %153 : vector<2x128xf32>
    %155 = math.exp %154 : vector<2x128xf32>
    %cst_27 = arith.constant 1.000000e+00 : f32
    %156 = vector.broadcast %cst_27 : f32 to vector<2x128xf32>
    %157 = arith.addf %156, %155 : vector<2x128xf32>
    %158 = arith.divf %156, %157 : vector<2x128xf32>
    %159 = math.tanh %153 : vector<2x128xf32>
    %160 = vector.extract_strided_slice %158 {offsets = [0, 0], sizes = [2, 32], strides = [1, 1]} : vector<2x128xf32> to vector<2x32xf32>
    %161 = vector.extract_strided_slice %158 {offsets = [0, 32], sizes = [2, 32], strides = [1, 1]} : vector<2x128xf32> to vector<2x32xf32>
    %162 = vector.extract_strided_slice %159 {offsets = [0, 64], sizes = [2, 32], strides = [1, 1]} : vector<2x128xf32> to vector<2x32xf32>
    %163 = vector.extract_strided_slice %158 {offsets = [0, 96], sizes = [2, 32], strides = [1, 1]} : vector<2x128xf32> to vector<2x32xf32>
    %164 = arith.mulf %161, %145 : vector<2x32xf32>
    %165 = arith.mulf %160, %162 : vector<2x32xf32>
    %166 = arith.addf %164, %165 : vector<2x32xf32>
    %167 = math.tanh %166 : vector<2x32xf32>
    %168 = arith.mulf %163, %167 : vector<2x32xf32>
    %169 = vector.extract_strided_slice %15 {offsets = [7, 0, 0], sizes = [1, 2, 128], strides = [1, 1, 1]} : vector<8x2x128xf32> to vector<1x2x128xf32>
    %170 = vector.shape_cast %169 : vector<1x2x128xf32> to vector<2x128xf32>
    %cst_28 = arith.constant dense<0.000000e+00> : vector<2x128xf32>
    %171 = tpu.matmul %168, %19, %cst_28 {dimension_numbers = #tpu.dot_dimension_numbers<[1], [0], [0], [1], [0, 0, 1, 1], [], []>} : vector<2x32xf32>, vector<32x128xf32>, vector<2x128xf32> -> vector<2x128xf32>
    %172 = arith.addf %170, %171 : vector<2x128xf32>
    %173 = vector.broadcast %20 : vector<1x128xf32> to vector<2x128xf32>
    %174 = arith.addf %172, %173 : vector<2x128xf32>
    %175 = arith.negf %174 : vector<2x128xf32>
    %176 = math.exp %175 : vector<2x128xf32>
    %cst_29 = arith.constant 1.000000e+00 : f32
    %177 = vector.broadcast %cst_29 : f32 to vector<2x128xf32>
    %178 = arith.addf %177, %176 : vector<2x128xf32>
    %179 = arith.divf %177, %178 : vector<2x128xf32>
    %180 = math.tanh %174 : vector<2x128xf32>
    %181 = vector.extract_strided_slice %179 {offsets = [0, 0], sizes = [2, 32], strides = [1, 1]} : vector<2x128xf32> to vector<2x32xf32>
    %182 = vector.extract_strided_slice %179 {offsets = [0, 32], sizes = [2, 32], strides = [1, 1]} : vector<2x128xf32> to vector<2x32xf32>
    %183 = vector.extract_strided_slice %180 {offsets = [0, 64], sizes = [2, 32], strides = [1, 1]} : vector<2x128xf32> to vector<2x32xf32>
    %184 = vector.extract_strided_slice %179 {offsets = [0, 96], sizes = [2, 32], strides = [1, 1]} : vector<2x128xf32> to vector<2x32xf32>
    %185 = arith.mulf %182, %166 : vector<2x32xf32>
    %186 = arith.mulf %181, %183 : vector<2x32xf32>
    %187 = arith.addf %185, %186 : vector<2x32xf32>
    %188 = math.tanh %187 : vector<2x32xf32>
    %189 = arith.mulf %184, %188 : vector<2x32xf32>
    %c32 = arith.constant 32 : index
    %c0_30 = arith.constant 0 : index
    %190 = vector.load %arg1[%c32, %c0_30] : memref<104x128xf32, #tpu.memory_space<vmem>>, vector<32x128xf32>
    %c98 = arith.constant 98 : index
    %c0_31 = arith.constant 0 : index
    %191 = vector.load %arg1[%c98, %c0_31] : memref<104x128xf32, #tpu.memory_space<vmem>>, vector<1x128xf32>
    %c64 = arith.constant 64 : index
    %c0_32 = arith.constant 0 : index
    %192 = vector.load %arg1[%c64, %c0_32] : memref<104x128xf32, #tpu.memory_space<vmem>>, vector<32x128xf32>
    %cst_33 = arith.constant 0.000000e+00 : f32
    %193 = vector.broadcast %cst_33 : f32 to vector<2x32xf32>
    %cst_34 = arith.constant dense<0.000000e+00> : vector<2x128xf32>
    %194 = tpu.matmul %42, %192, %cst_34 {dimension_numbers = #tpu.dot_dimension_numbers<[1], [0], [0], [1], [0, 0, 1, 1], [], []>} : vector<2x32xf32>, vector<32x128xf32>, vector<2x128xf32> -> vector<2x128xf32>
    %cst_35 = arith.constant dense<0.000000e+00> : vector<2x128xf32>
    %195 = tpu.matmul %18, %190, %cst_35 {dimension_numbers = #tpu.dot_dimension_numbers<[1], [0], [0], [1], [0, 0, 1, 1], [], []>} : vector<2x32xf32>, vector<32x128xf32>, vector<2x128xf32> -> vector<2x128xf32>
    %196 = arith.addf %194, %195 : vector<2x128xf32>
    %197 = vector.broadcast %191 : vector<1x128xf32> to vector<2x128xf32>
    %198 = arith.addf %196, %197 : vector<2x128xf32>
    %199 = arith.negf %198 : vector<2x128xf32>
    %200 = math.exp %199 : vector<2x128xf32>
    %cst_36 = arith.constant 1.000000e+00 : f32
    %201 = vector.broadcast %cst_36 : f32 to vector<2x128xf32>
    %202 = arith.addf %201, %200 : vector<2x128xf32>
    %203 = arith.divf %201, %202 : vector<2x128xf32>
    %204 = math.tanh %198 : vector<2x128xf32>
    %205 = vector.extract_strided_slice %203 {offsets = [0, 0], sizes = [2, 32], strides = [1, 1]} : vector<2x128xf32> to vector<2x32xf32>
    %206 = vector.extract_strided_slice %203 {offsets = [0, 32], sizes = [2, 32], strides = [1, 1]} : vector<2x128xf32> to vector<2x32xf32>
    %207 = vector.extract_strided_slice %204 {offsets = [0, 64], sizes = [2, 32], strides = [1, 1]} : vector<2x128xf32> to vector<2x32xf32>
    %208 = vector.extract_strided_slice %203 {offsets = [0, 96], sizes = [2, 32], strides = [1, 1]} : vector<2x128xf32> to vector<2x32xf32>
    %209 = arith.mulf %206, %193 : vector<2x32xf32>
    %210 = arith.mulf %205, %207 : vector<2x32xf32>
    %211 = arith.addf %209, %210 : vector<2x32xf32>
    %212 = math.tanh %211 : vector<2x32xf32>
    %213 = arith.mulf %208, %212 : vector<2x32xf32>
    %cst_37 = arith.constant dense<0.000000e+00> : vector<2x128xf32>
    %214 = tpu.matmul %63, %192, %cst_37 {dimension_numbers = #tpu.dot_dimension_numbers<[1], [0], [0], [1], [0, 0, 1, 1], [], []>} : vector<2x32xf32>, vector<32x128xf32>, vector<2x128xf32> -> vector<2x128xf32>
    %cst_38 = arith.constant dense<0.000000e+00> : vector<2x128xf32>
    %215 = tpu.matmul %213, %190, %cst_38 {dimension_numbers = #tpu.dot_dimension_numbers<[1], [0], [0], [1], [0, 0, 1, 1], [], []>} : vector<2x32xf32>, vector<32x128xf32>, vector<2x128xf32> -> vector<2x128xf32>
    %216 = arith.addf %214, %215 : vector<2x128xf32>
    %217 = vector.broadcast %191 : vector<1x128xf32> to vector<2x128xf32>
    %218 = arith.addf %216, %217 : vector<2x128xf32>
    %219 = arith.negf %218 : vector<2x128xf32>
    %220 = math.exp %219 : vector<2x128xf32>
    %cst_39 = arith.constant 1.000000e+00 : f32
    %221 = vector.broadcast %cst_39 : f32 to vector<2x128xf32>
    %222 = arith.addf %221, %220 : vector<2x128xf32>
    %223 = arith.divf %221, %222 : vector<2x128xf32>
    %224 = math.tanh %218 : vector<2x128xf32>
    %225 = vector.extract_strided_slice %223 {offsets = [0, 0], sizes = [2, 32], strides = [1, 1]} : vector<2x128xf32> to vector<2x32xf32>
    %226 = vector.extract_strided_slice %223 {offsets = [0, 32], sizes = [2, 32], strides = [1, 1]} : vector<2x128xf32> to vector<2x32xf32>
    %227 = vector.extract_strided_slice %224 {offsets = [0, 64], sizes = [2, 32], strides = [1, 1]} : vector<2x128xf32> to vector<2x32xf32>
    %228 = vector.extract_strided_slice %223 {offsets = [0, 96], sizes = [2, 32], strides = [1, 1]} : vector<2x128xf32> to vector<2x32xf32>
    %229 = arith.mulf %226, %211 : vector<2x32xf32>
    %230 = arith.mulf %225, %227 : vector<2x32xf32>
    %231 = arith.addf %229, %230 : vector<2x32xf32>
    %232 = math.tanh %231 : vector<2x32xf32>
    %233 = arith.mulf %228, %232 : vector<2x32xf32>
    %cst_40 = arith.constant dense<0.000000e+00> : vector<2x128xf32>
    %234 = tpu.matmul %84, %192, %cst_40 {dimension_numbers = #tpu.dot_dimension_numbers<[1], [0], [0], [1], [0, 0, 1, 1], [], []>} : vector<2x32xf32>, vector<32x128xf32>, vector<2x128xf32> -> vector<2x128xf32>
    %cst_41 = arith.constant dense<0.000000e+00> : vector<2x128xf32>
    %235 = tpu.matmul %233, %190, %cst_41 {dimension_numbers = #tpu.dot_dimension_numbers<[1], [0], [0], [1], [0, 0, 1, 1], [], []>} : vector<2x32xf32>, vector<32x128xf32>, vector<2x128xf32> -> vector<2x128xf32>
    %236 = arith.addf %234, %235 : vector<2x128xf32>
    %237 = vector.broadcast %191 : vector<1x128xf32> to vector<2x128xf32>
    %238 = arith.addf %236, %237 : vector<2x128xf32>
    %239 = arith.negf %238 : vector<2x128xf32>
    %240 = math.exp %239 : vector<2x128xf32>
    %cst_42 = arith.constant 1.000000e+00 : f32
    %241 = vector.broadcast %cst_42 : f32 to vector<2x128xf32>
    %242 = arith.addf %241, %240 : vector<2x128xf32>
    %243 = arith.divf %241, %242 : vector<2x128xf32>
    %244 = math.tanh %238 : vector<2x128xf32>
    %245 = vector.extract_strided_slice %243 {offsets = [0, 0], sizes = [2, 32], strides = [1, 1]} : vector<2x128xf32> to vector<2x32xf32>
    %246 = vector.extract_strided_slice %243 {offsets = [0, 32], sizes = [2, 32], strides = [1, 1]} : vector<2x128xf32> to vector<2x32xf32>
    %247 = vector.extract_strided_slice %244 {offsets = [0, 64], sizes = [2, 32], strides = [1, 1]} : vector<2x128xf32> to vector<2x32xf32>
    %248 = vector.extract_strided_slice %243 {offsets = [0, 96], sizes = [2, 32], strides = [1, 1]} : vector<2x128xf32> to vector<2x32xf32>
    %249 = arith.mulf %246, %231 : vector<2x32xf32>
    %250 = arith.mulf %245, %247 : vector<2x32xf32>
    %251 = arith.addf %249, %250 : vector<2x32xf32>
    %252 = math.tanh %251 : vector<2x32xf32>
    %253 = arith.mulf %248, %252 : vector<2x32xf32>
    %cst_43 = arith.constant dense<0.000000e+00> : vector<2x128xf32>
    %254 = tpu.matmul %105, %192, %cst_43 {dimension_numbers = #tpu.dot_dimension_numbers<[1], [0], [0], [1], [0, 0, 1, 1], [], []>} : vector<2x32xf32>, vector<32x128xf32>, vector<2x128xf32> -> vector<2x128xf32>
    %cst_44 = arith.constant dense<0.000000e+00> : vector<2x128xf32>
    %255 = tpu.matmul %253, %190, %cst_44 {dimension_numbers = #tpu.dot_dimension_numbers<[1], [0], [0], [1], [0, 0, 1, 1], [], []>} : vector<2x32xf32>, vector<32x128xf32>, vector<2x128xf32> -> vector<2x128xf32>
    %256 = arith.addf %254, %255 : vector<2x128xf32>
    %257 = vector.broadcast %191 : vector<1x128xf32> to vector<2x128xf32>
    %258 = arith.addf %256, %257 : vector<2x128xf32>
    %259 = arith.negf %258 : vector<2x128xf32>
    %260 = math.exp %259 : vector<2x128xf32>
    %cst_45 = arith.constant 1.000000e+00 : f32
    %261 = vector.broadcast %cst_45 : f32 to vector<2x128xf32>
    %262 = arith.addf %261, %260 : vector<2x128xf32>
    %263 = arith.divf %261, %262 : vector<2x128xf32>
    %264 = math.tanh %258 : vector<2x128xf32>
    %265 = vector.extract_strided_slice %263 {offsets = [0, 0], sizes = [2, 32], strides = [1, 1]} : vector<2x128xf32> to vector<2x32xf32>
    %266 = vector.extract_strided_slice %263 {offsets = [0, 32], sizes = [2, 32], strides = [1, 1]} : vector<2x128xf32> to vector<2x32xf32>
    %267 = vector.extract_strided_slice %264 {offsets = [0, 64], sizes = [2, 32], strides = [1, 1]} : vector<2x128xf32> to vector<2x32xf32>
    %268 = vector.extract_strided_slice %263 {offsets = [0, 96], sizes = [2, 32], strides = [1, 1]} : vector<2x128xf32> to vector<2x32xf32>
    %269 = arith.mulf %266, %251 : vector<2x32xf32>
    %270 = arith.mulf %265, %267 : vector<2x32xf32>
    %271 = arith.addf %269, %270 : vector<2x32xf32>
    %272 = math.tanh %271 : vector<2x32xf32>
    %273 = arith.mulf %268, %272 : vector<2x32xf32>
    %cst_46 = arith.constant dense<0.000000e+00> : vector<2x128xf32>
    %274 = tpu.matmul %126, %192, %cst_46 {dimension_numbers = #tpu.dot_dimension_numbers<[1], [0], [0], [1], [0, 0, 1, 1], [], []>} : vector<2x32xf32>, vector<32x128xf32>, vector<2x128xf32> -> vector<2x128xf32>
    %cst_47 = arith.constant dense<0.000000e+00> : vector<2x128xf32>
    %275 = tpu.matmul %273, %190, %cst_47 {dimension_numbers = #tpu.dot_dimension_numbers<[1], [0], [0], [1], [0, 0, 1, 1], [], []>} : vector<2x32xf32>, vector<32x128xf32>, vector<2x128xf32> -> vector<2x128xf32>
    %276 = arith.addf %274, %275 : vector<2x128xf32>
    %277 = vector.broadcast %191 : vector<1x128xf32> to vector<2x128xf32>
    %278 = arith.addf %276, %277 : vector<2x128xf32>
    %279 = arith.negf %278 : vector<2x128xf32>
    %280 = math.exp %279 : vector<2x128xf32>
    %cst_48 = arith.constant 1.000000e+00 : f32
    %281 = vector.broadcast %cst_48 : f32 to vector<2x128xf32>
    %282 = arith.addf %281, %280 : vector<2x128xf32>
    %283 = arith.divf %281, %282 : vector<2x128xf32>
    %284 = math.tanh %278 : vector<2x128xf32>
    %285 = vector.extract_strided_slice %283 {offsets = [0, 0], sizes = [2, 32], strides = [1, 1]} : vector<2x128xf32> to vector<2x32xf32>
    %286 = vector.extract_strided_slice %283 {offsets = [0, 32], sizes = [2, 32], strides = [1, 1]} : vector<2x128xf32> to vector<2x32xf32>
    %287 = vector.extract_strided_slice %284 {offsets = [0, 64], sizes = [2, 32], strides = [1, 1]} : vector<2x128xf32> to vector<2x32xf32>
    %288 = vector.extract_strided_slice %283 {offsets = [0, 96], sizes = [2, 32], strides = [1, 1]} : vector<2x128xf32> to vector<2x32xf32>
    %289 = arith.mulf %286, %271 : vector<2x32xf32>
    %290 = arith.mulf %285, %287 : vector<2x32xf32>
    %291 = arith.addf %289, %290 : vector<2x32xf32>
    %292 = math.tanh %291 : vector<2x32xf32>
    %293 = arith.mulf %288, %292 : vector<2x32xf32>
    %cst_49 = arith.constant dense<0.000000e+00> : vector<2x128xf32>
    %294 = tpu.matmul %147, %192, %cst_49 {dimension_numbers = #tpu.dot_dimension_numbers<[1], [0], [0], [1], [0, 0, 1, 1], [], []>} : vector<2x32xf32>, vector<32x128xf32>, vector<2x128xf32> -> vector<2x128xf32>
    %cst_50 = arith.constant dense<0.000000e+00> : vector<2x128xf32>
    %295 = tpu.matmul %293, %190, %cst_50 {dimension_numbers = #tpu.dot_dimension_numbers<[1], [0], [0], [1], [0, 0, 1, 1], [], []>} : vector<2x32xf32>, vector<32x128xf32>, vector<2x128xf32> -> vector<2x128xf32>
    %296 = arith.addf %294, %295 : vector<2x128xf32>
    %297 = vector.broadcast %191 : vector<1x128xf32> to vector<2x128xf32>
    %298 = arith.addf %296, %297 : vector<2x128xf32>
    %299 = arith.negf %298 : vector<2x128xf32>
    %300 = math.exp %299 : vector<2x128xf32>
    %cst_51 = arith.constant 1.000000e+00 : f32
    %301 = vector.broadcast %cst_51 : f32 to vector<2x128xf32>
    %302 = arith.addf %301, %300 : vector<2x128xf32>
    %303 = arith.divf %301, %302 : vector<2x128xf32>
    %304 = math.tanh %298 : vector<2x128xf32>
    %305 = vector.extract_strided_slice %303 {offsets = [0, 0], sizes = [2, 32], strides = [1, 1]} : vector<2x128xf32> to vector<2x32xf32>
    %306 = vector.extract_strided_slice %303 {offsets = [0, 32], sizes = [2, 32], strides = [1, 1]} : vector<2x128xf32> to vector<2x32xf32>
    %307 = vector.extract_strided_slice %304 {offsets = [0, 64], sizes = [2, 32], strides = [1, 1]} : vector<2x128xf32> to vector<2x32xf32>
    %308 = vector.extract_strided_slice %303 {offsets = [0, 96], sizes = [2, 32], strides = [1, 1]} : vector<2x128xf32> to vector<2x32xf32>
    %309 = arith.mulf %306, %291 : vector<2x32xf32>
    %310 = arith.mulf %305, %307 : vector<2x32xf32>
    %311 = arith.addf %309, %310 : vector<2x32xf32>
    %312 = math.tanh %311 : vector<2x32xf32>
    %313 = arith.mulf %308, %312 : vector<2x32xf32>
    %cst_52 = arith.constant dense<0.000000e+00> : vector<2x128xf32>
    %314 = tpu.matmul %168, %192, %cst_52 {dimension_numbers = #tpu.dot_dimension_numbers<[1], [0], [0], [1], [0, 0, 1, 1], [], []>} : vector<2x32xf32>, vector<32x128xf32>, vector<2x128xf32> -> vector<2x128xf32>
    %cst_53 = arith.constant dense<0.000000e+00> : vector<2x128xf32>
    %315 = tpu.matmul %313, %190, %cst_53 {dimension_numbers = #tpu.dot_dimension_numbers<[1], [0], [0], [1], [0, 0, 1, 1], [], []>} : vector<2x32xf32>, vector<32x128xf32>, vector<2x128xf32> -> vector<2x128xf32>
    %316 = arith.addf %314, %315 : vector<2x128xf32>
    %317 = vector.broadcast %191 : vector<1x128xf32> to vector<2x128xf32>
    %318 = arith.addf %316, %317 : vector<2x128xf32>
    %319 = arith.negf %318 : vector<2x128xf32>
    %320 = math.exp %319 : vector<2x128xf32>
    %cst_54 = arith.constant 1.000000e+00 : f32
    %321 = vector.broadcast %cst_54 : f32 to vector<2x128xf32>
    %322 = arith.addf %321, %320 : vector<2x128xf32>
    %323 = arith.divf %321, %322 : vector<2x128xf32>
    %324 = math.tanh %318 : vector<2x128xf32>
    %325 = vector.extract_strided_slice %323 {offsets = [0, 0], sizes = [2, 32], strides = [1, 1]} : vector<2x128xf32> to vector<2x32xf32>
    %326 = vector.extract_strided_slice %323 {offsets = [0, 32], sizes = [2, 32], strides = [1, 1]} : vector<2x128xf32> to vector<2x32xf32>
    %327 = vector.extract_strided_slice %324 {offsets = [0, 64], sizes = [2, 32], strides = [1, 1]} : vector<2x128xf32> to vector<2x32xf32>
    %328 = vector.extract_strided_slice %323 {offsets = [0, 96], sizes = [2, 32], strides = [1, 1]} : vector<2x128xf32> to vector<2x32xf32>
    %329 = arith.mulf %326, %311 : vector<2x32xf32>
    %330 = arith.mulf %325, %327 : vector<2x32xf32>
    %331 = arith.addf %329, %330 : vector<2x32xf32>
    %332 = math.tanh %331 : vector<2x32xf32>
    %333 = arith.mulf %328, %332 : vector<2x32xf32>
    %cst_55 = arith.constant dense<0.000000e+00> : vector<2x128xf32>
    %334 = tpu.matmul %189, %192, %cst_55 {dimension_numbers = #tpu.dot_dimension_numbers<[1], [0], [0], [1], [0, 0, 1, 1], [], []>} : vector<2x32xf32>, vector<32x128xf32>, vector<2x128xf32> -> vector<2x128xf32>
    %cst_56 = arith.constant dense<0.000000e+00> : vector<2x128xf32>
    %335 = tpu.matmul %333, %190, %cst_56 {dimension_numbers = #tpu.dot_dimension_numbers<[1], [0], [0], [1], [0, 0, 1, 1], [], []>} : vector<2x32xf32>, vector<32x128xf32>, vector<2x128xf32> -> vector<2x128xf32>
    %336 = arith.addf %334, %335 : vector<2x128xf32>
    %337 = vector.broadcast %191 : vector<1x128xf32> to vector<2x128xf32>
    %338 = arith.addf %336, %337 : vector<2x128xf32>
    %339 = arith.negf %338 : vector<2x128xf32>
    %340 = math.exp %339 : vector<2x128xf32>
    %cst_57 = arith.constant 1.000000e+00 : f32
    %341 = vector.broadcast %cst_57 : f32 to vector<2x128xf32>
    %342 = arith.addf %341, %340 : vector<2x128xf32>
    %343 = arith.divf %341, %342 : vector<2x128xf32>
    %344 = math.tanh %338 : vector<2x128xf32>
    %345 = vector.extract_strided_slice %343 {offsets = [0, 0], sizes = [2, 32], strides = [1, 1]} : vector<2x128xf32> to vector<2x32xf32>
    %346 = vector.extract_strided_slice %343 {offsets = [0, 32], sizes = [2, 32], strides = [1, 1]} : vector<2x128xf32> to vector<2x32xf32>
    %347 = vector.extract_strided_slice %344 {offsets = [0, 64], sizes = [2, 32], strides = [1, 1]} : vector<2x128xf32> to vector<2x32xf32>
    %348 = vector.extract_strided_slice %343 {offsets = [0, 96], sizes = [2, 32], strides = [1, 1]} : vector<2x128xf32> to vector<2x32xf32>
    %349 = arith.mulf %346, %331 : vector<2x32xf32>
    %350 = arith.mulf %345, %347 : vector<2x32xf32>
    %351 = arith.addf %349, %350 : vector<2x32xf32>
    %352 = math.tanh %351 : vector<2x32xf32>
    %353 = arith.mulf %348, %352 : vector<2x32xf32>
    %cst_58 = arith.constant dense<0.000000e+00> : vector<2x32xf32>
    %354 = tpu.matmul %353, %4, %cst_58 {dimension_numbers = #tpu.dot_dimension_numbers<[1], [0], [0], [1], [0, 0, 1, 1], [], []>} : vector<2x32xf32>, vector<32x32xf32>, vector<2x32xf32> -> vector<2x32xf32>
    %355 = vector.broadcast %5 : vector<1x32xf32> to vector<2x32xf32>
    %356 = arith.addf %354, %355 : vector<2x32xf32>
    %357 = vector.extract_strided_slice %356 {offsets = [0, 0], sizes = [2, 1], strides = [1, 1]} : vector<2x32xf32> to vector<2x1xf32>
    %cst_59 = arith.constant 2.000000e+00 : f32
    %358 = vector.broadcast %cst_59 : f32 to vector<2x1xf32>
    %359 = arith.mulf %357, %358 : vector<2x1xf32>
    %cst_60 = arith.constant 5.000000e-01 : f32
    %360 = vector.broadcast %cst_60 : f32 to vector<2x1xf32>
    %361 = arith.addf %359, %360 : vector<2x1xf32>
    %c0_61 = arith.constant 0 : index
    %c0_62 = arith.constant 0 : index
    %362 = vector.load %arg3[%c0_61, %c0_62] : memref<2x1xf32, #tpu.memory_space<vmem>>, vector<2x1xf32>
    tpu.vector_store %arg3[%c0_61, %c0_62], %361 {strides = array<i32>} : memref<2x1xf32, #tpu.memory_space<vmem>>, vector<2x1xf32>,
    return
  }
}

</mosaic_0001>

<llo_original>
// kernel: decoder_forward.1
$region0: #{decoder_forward.1}
  #allocation0 [shape = 'u32[]', space=smem, size = 0x4, offset = 0x4, fixed_abs, tag = 'smem constant byte address 0x4 - core index']
  #allocation1 [shape = 'u32[144,128]{1,0:T(1,128)}', space=vmem, size = 0x12000, scoped, tag = 'internal scratch']
  %s0 = inlined_call_operand.vmem [shape: f32[16,16], index: 0, kind: input, shape index: {}]
  %s1 = inlined_call_operand.vmem [shape: f32[104,128], index: 1, kind: input, shape index: {}]
  %s2 = inlined_call_operand.vmem [shape: f32[56,32], index: 2, kind: input, shape index: {}]
  %s3 = inlined_call_operand.vmem [shape: f32[2,1], index: 3, kind: output, shape index: {}]
  %s4 = sld [smem:[#allocation0]]
  $region22: #{decoder_forward.1} parent=0
    _
  %s6 = ssub.s32 1, %s4
  %s7 = scalar_select 0, %s6, %s4
  // Predicated region
  $region2: #{decoder_forward.1} parent=0 // pred_check
    _
  $region3: #{decoder_forward.1} parent=0 // pred_check_branch
    %9 = sbr.rel (0) target = $region5
  $region4: #{decoder_forward.1} parent=0 // pred_region
    _
  $region5: #{decoder_forward.1} parent=0 // pred_fallthru
    _
  // Predicated region
  $region6: #{decoder_forward.1} parent=0 // pred_check
    _
  $region7: #{decoder_forward.1} parent=0 // pred_check_branch
    %11 = sbr.rel (0) target = $region9
  $region8: #{decoder_forward.1} parent=0 // pred_region
    _
  $region9: #{decoder_forward.1} parent=0 // pred_fallthru
    _
  // Predicated region
  $region10: #{decoder_forward.1} parent=0 // pred_check
    _
  $region11: #{decoder_forward.1} parent=0 // pred_check_branch
    %13 = sbr.rel (0) target = $region13
  $region12: #{decoder_forward.1} parent=0 // pred_region
    _
  $region13: #{decoder_forward.1} parent=0 // pred_fallthru
    _
  %v14 = vld [vmem:[%s0] sm:$0x3]
  %v15 = vld [vmem:[%s0 + $0x2] sm:$0xff]
  %v16 = vld [vmem:[%s2] sm:$0xff]
  %v17 = vld [vmem:[%s2 + $0x8] sm:$0xff]
  %v18 = vld [vmem:[%s2 + $0x10] sm:$0x1]
  %v19 = vld [vmem:[%s2 + $0x11] sm:$0xff]
  %v20 = vld [vmem:[%s2 + $0x19] sm:$0xff]
  %v21 = vld [vmem:[%s2 + $0x21] sm:$0xff]
  %v22 = vld [vmem:[%s2 + $0x29] sm:$0xff]
  %v23 = vld [vmem:[%s2 + $0x31] sm:$0x1]
  %v24 = vld [vmem:[%s1 + $0x60] sm:$0x1]
  %v25 = vsub.f32 %v15, 0.5
  %v26 = vmul.f32 %v25, 0.5
  %v27 = vlaneseq
  %v28 = vshrl.u32 %v27, 7
  %v29 = vsub.s32 0, %v28
  %v30 = vrot.slane %v26, %v29
  %32 = vbcast.lane.b32.xlu0 %v30, 256
  %v33 = vpop.permute.xlu0 %32
  %v34 = vlaneseq
  %v35 = vshrl.u32 %v34, 7
  %v36 = vsub.s32 1, %v35
  %v37 = vrot.slane %v26, %v36
  %39 = vbcast.lane.b32.xlu0 %v37, 256
  %v40 = vpop.permute.xlu0 %39
  %v41 = vlaneseq
  %v42 = vshrl.u32 %v41, 7
  %v43 = vsub.s32 2, %v42
  %v44 = vrot.slane %v26, %v43
  %46 = vbcast.lane.b32.xlu0 %v44, 256
  %v47 = vpop.permute.xlu0 %46
  %v48 = vlaneseq
  %v49 = vshrl.u32 %v48, 7
  %v50 = vsub.s32 3, %v49
  %v51 = vrot.slane %v26, %v50
  %53 = vbcast.lane.b32.xlu0 %v51, 256
  %v54 = vpop.permute.xlu0 %53
  %v55 = vlaneseq
  %v56 = vshrl.u32 %v55, 7
  %v57 = vsub.s32 4, %v56
  %v58 = vrot.slane %v26, %v57
  %60 = vbcast.lane.b32.xlu0 %v58, 256
  %v61 = vpop.permute.xlu0 %60
  %v62 = vlaneseq
  %v63 = vshrl.u32 %v62, 7
  %v64 = vsub.s32 5, %v63
  %v65 = vrot.slane %v26, %v64
  %67 = vbcast.lane.b32.xlu0 %v65, 256
  %v68 = vpop.permute.xlu0 %67
  %v69 = vlaneseq
  %v70 = vshrl.u32 %v69, 7
  %v71 = vsub.s32 6, %v70
  %v72 = vrot.slane %v26, %v71
  %74 = vbcast.lane.b32.xlu0 %v72, 256
  %v75 = vpop.permute.xlu0 %74
  %v76 = vlaneseq
  %v77 = vshrl.u32 %v76, 7
  %v78 = vsub.s32 7, %v77
  %v79 = vrot.slane %v26, %v78
  %81 = vbcast.lane.b32.xlu0 %v79, 256
  %v82 = vpop.permute.xlu0 %81
  %v83 = vlaneseq
  %v84 = vshrl.u32 %v83, 7
  %v85 = vsub.s32 0, %v84
  %v86 = vrot.slane %v24, %v85
  %v87 = vmul.f32 %v33, %v86
  %v88 = vmul.f32 %v40, %v86
  %v89 = vmul.f32 %v47, %v86
  %v90 = vmul.f32 %v54, %v86
  %v91 = vmul.f32 %v61, %v86
  %v92 = vmul.f32 %v68, %v86
  %v93 = vmul.f32 %v75, %v86
  %v94 = vmul.f32 %v82, %v86
  %v95 = vlaneseq
  %v96 = vshrl.u32 %v95, 7
  %v97 = vsub.s32 0, %v96
  %v98 = vrot.slane %v18, %v97
  %vm99 = vcmask 130048
  %v101 = vsel %vm99, %v14, 0
  %103 = vmatprep.subr.mxu0 0.0
  %104 = vmatpush1.msra.mxu0 %v16
  %105 = vmatprep.subr.mxu0 0.0
  %106 = vmatpush1.msra.mxu0 %v17
  %107 = vmatprep.subr.mxu0 0.0
  %108 = vmatpush1.msra.mxu0 0.0
  %109 = vmatprep.subr.mxu0 0.0
  %110 = vmatpush1.msra.mxu0 0.0
  %111 = vmatprep.subr.mxu0 0.0
  %112 = vmatpush1.msra.mxu0 0.0
  %113 = vmatprep.subr.mxu0 0.0
  %114 = vmatpush1.msra.mxu0 0.0
  %115 = vmatprep.subr.mxu0 0.0
  %116 = vmatpush1.msra.mxu0 0.0
  %117 = vmatprep.subr.mxu0 0.0
  %118 = vmatpush1.msra.mxu0 0.0
  %119 = vmatprep.subr.mxu0 0.0
  %120 = vmatpush1.msra.mxu0 0.0
  %121 = vmatprep.subr.mxu0 0.0
  %122 = vmatpush1.msra.mxu0 0.0
  %123 = vmatprep.subr.mxu0 0.0
  %124 = vmatpush1.msra.mxu0 0.0
  %125 = vmatprep.subr.mxu0 0.0
  %126 = vmatpush1.msra.mxu0 0.0
  %127 = vmatprep.subr.mxu0 0.0
  %128 = vmatpush1.msra.mxu0 0.0
  %129 = vmatprep.subr.mxu0 0.0
  %130 = vmatpush1.msra.mxu0 0.0
  %131 = vmatprep.subr.mxu0 0.0
  %132 = vmatpush1.msra.mxu0 0.0
  %133 = vmatprep.subr.mxu0 0.0
  %134 = vmatpush1.msra.mxu0 0.0
  %135 = vmatprep.subr.mxu0 0.0
  %136 = vmatpush1.msra.mxu0 0.0
  %137 = vmatprep.subr.mxu0 0.0
  %138 = vmatpush1.msra.mxu0 0.0
  %139 = vmatprep.subr.mxu0 0.0
  %140 = vmatpush1.msra.mxu0 0.0
  %141 = vmatprep.subr.mxu0 0.0
  %142 = vmatpush1.msra.mxu0 0.0
  %143 = vmatprep.subr.mxu0 0.0
  %144 = vmatpush1.msra.mxu0 0.0
  %145 = vmatprep.subr.mxu0 0.0
  %146 = vmatpush1.msra.mxu0 0.0
  %147 = vmatprep.subr.mxu0 0.0
  %148 = vmatpush1.msra.mxu0 0.0
  %149 = vmatprep.subr.mxu0 0.0
  %150 = vmatpush1.msra.mxu0 0.0
  %151 = vmatprep.subr.mxu0 0.0
  %152 = vmatpush1.msra.mxu0 0.0
  %153 = vmatprep.subr.mxu0 0.0
  %154 = vmatpush1.msra.mxu0 0.0
  %155 = vmatprep.subr.mxu0 0.0
  %156 = vmatpush1.msra.mxu0 0.0
  %157 = vmatprep.subr.mxu0 0.0
  %158 = vmatpush1.msra.mxu0 0.0
  %159 = vmatprep.subr.mxu0 0.0
  %160 = vmatpush1.msra.mxu0 0.0
  %161 = vmatprep.subr.mxu0 0.0
  %162 = vmatpush1.msra.mxu0 0.0
  %163 = vmatprep.subr.mxu0 0.0
  %164 = vmatpush1.msra.mxu0 0.0
  %165 = vmatprep.subr.mxu0 0.0
  %166 = vmatpush1.msra.mxu0 0.0
  %167 = vmatprep.mubr.f32.mxu0 0.0
  %168 = vmatmul.mubr.f32.gmra.mrb[0].mxu0 %v101
  %v169 = vpop.f32.mrb[0].mxu0
  %v170 = vadd.f32 %v98, %v169
  %v171 = vpop.f32.mrb[0].mxu0
  %172 = vdwg.mxu0
  %v173 = vld [vmem:[%s1] sm:$0xff]
  %v174 = vld [vmem:[%s1 + $0x8] sm:$0xff]
  %v175 = vld [vmem:[%s1 + $0x10] sm:$0xff]
  %v176 = vld [vmem:[%s1 + $0x18] sm:$0xff]
  %v177 = vld [vmem:[%s1 + $0x61] sm:$0x1]
  %vm178 = vcmask 261120
  %v180 = vsel %vm178, %v170, 0
  %182 = vmatprep.subr.mxu0 0.0
  %183 = vmatpush1.msra.mxu0 %v173
  %184 = vmatprep.subr.mxu0 0.0
  %185 = vmatpush1.msra.mxu0 %v174
  %186 = vmatprep.subr.mxu0 0.0
  %187 = vmatpush1.msra.mxu0 %v175
  %188 = vmatprep.subr.mxu0 0.0
  %189 = vmatpush1.msra.mxu0 %v176
  %190 = vmatprep.subr.mxu0 0.0
  %191 = vmatpush1.msra.mxu0 0.0
  %192 = vmatprep.subr.mxu0 0.0
  %193 = vmatpush1.msra.mxu0 0.0
  %194 = vmatprep.subr.mxu0 0.0
  %195 = vmatpush1.msra.mxu0 0.0
  %196 = vmatprep.subr.mxu0 0.0
  %197 = vmatpush1.msra.mxu0 0.0
  %198 = vmatprep.subr.mxu0 0.0
  %199 = vmatpush1.msra.mxu0 0.0
  %200 = vmatprep.subr.mxu0 0.0
  %201 = vmatpush1.msra.mxu0 0.0
  %202 = vmatprep.subr.mxu0 0.0
  %203 = vmatpush1.msra.mxu0 0.0
  %204 = vmatprep.subr.mxu0 0.0
  %205 = vmatpush1.msra.mxu0 0.0
  %206 = vmatprep.subr.mxu0 0.0
  %207 = vmatpush1.msra.mxu0 0.0
  %208 = vmatprep.subr.mxu0 0.0
  %209 = vmatpush1.msra.mxu0 0.0
  %210 = vmatprep.subr.mxu0 0.0
  %211 = vmatpush1.msra.mxu0 0.0
  %212 = vmatprep.subr.mxu0 0.0
  %213 = vmatpush1.msra.mxu0 0.0
  %214 = vmatprep.subr.mxu0 0.0
  %215 = vmatpush1.msra.mxu0 0.0
  %216 = vmatprep.subr.mxu0 0.0
  %217 = vmatpush1.msra.mxu0 0.0
  %218 = vmatprep.subr.mxu0 0.0
  %219 = vmatpush1.msra.mxu0 0.0
  %220 = vmatprep.subr.mxu0 0.0
  %221 = vmatpush1.msra.mxu0 0.0
  %222 = vmatprep.subr.mxu0 0.0
  %223 = vmatpush1.msra.mxu0 0.0
  %224 = vmatprep.subr.mxu0 0.0
  %225 = vmatpush1.msra.mxu0 0.0
  %226 = vmatprep.subr.mxu0 0.0
  %227 = vmatpush1.msra.mxu0 0.0
  %228 = vmatprep.subr.mxu0 0.0
  %229 = vmatpush1.msra.mxu0 0.0
  %230 = vmatprep.subr.mxu0 0.0
  %231 = vmatpush1.msra.mxu0 0.0
  %232 = vmatprep.subr.mxu0 0.0
  %233 = vmatpush1.msra.mxu0 0.0
  %234 = vmatprep.subr.mxu0 0.0
  %235 = vmatpush1.msra.mxu0 0.0
  %236 = vmatprep.subr.mxu0 0.0
  %237 = vmatpush1.msra.mxu0 0.0
  %238 = vmatprep.subr.mxu0 0.0
  %239 = vmatpush1.msra.mxu0 0.0
  %240 = vmatprep.subr.mxu0 0.0
  %241 = vmatpush1.msra.mxu0 0.0
  %242 = vmatprep.subr.mxu0 0.0
  %243 = vmatpush1.msra.mxu0 0.0
  %244 = vmatprep.subr.mxu0 0.0
  %245 = vmatpush1.msra.mxu0 0.0
  %246 = vmatprep.mubr.f32.mxu0 0.0
  %247 = vmatmul.mubr.f32.gmra.mrb[0].mxu0 %v180
  %v248 = vpop.f32.mrb[0].mxu0
  %v249 = vadd.f32 0.0, %v248
  %v250 = vpop.f32.mrb[0].mxu0
  %251 = vdwg.mxu0
  %v252 = vadd.f32 %v87, %v249
  %v253 = vlaneseq
  %v254 = vshrl.u32 %v253, 7
  %v255 = vsub.s32 0, %v254
  %v256 = vrot.slane %v177, %v255
  %v257 = vadd.f32 %v252, %v256
  %v258 = vxor.u32 %v257, 2147483648
  %v259 = vmul.f32 %v258, 1.442695
  %v260 = vpow.pop %v259
  %v261 = vadd.f32 %v260, 1.0
  %v262 = vrcp.pop %v261
  %v263 = vmul.f32 1.0, %v262
  %v264 = vtanh.pop %v257
  %v265 = vmul.f32 %v263, 0.0
  %267 = vrot.lane.b32.xlu0 %v264, 64
  %v268 = vpop.permute.xlu0 %267
  %v270 = vmul.f32 %v263, %v268
  %272 = vrot.lane.b32.xlu0 %v270, 32
  %v273 = vpop.permute.xlu0 %272
  %v275 = vadd.f32 %v265, %v273
  %v276 = vtanh.pop %v275
  %278 = vrot.lane.b32.xlu0 %v276, 64
  %v279 = vpop.permute.xlu0 %278
  %v281 = vmul.f32 %v263, %v279
  %283 = vrot.lane.b32.xlu0 %v281, 32
  %v284 = vpop.permute.xlu0 %283
  %v285 = vsel %vm178, %v284, 0
  %287 = vmatprep.subr.mxu0 0.0
  %288 = vmatpush1.msra.mxu0 %v173
  %289 = vmatprep.subr.mxu0 0.0
  %290 = vmatpush1.msra.mxu0 %v174
  %291 = vmatprep.subr.mxu0 0.0
  %292 = vmatpush1.msra.mxu0 %v175
  %293 = vmatprep.subr.mxu0 0.0
  %294 = vmatpush1.msra.mxu0 %v176
  %295 = vmatprep.subr.mxu0 0.0
  %296 = vmatpush1.msra.mxu0 0.0
  %297 = vmatprep.subr.mxu0 0.0
  %298 = vmatpush1.msra.mxu0 0.0
  %299 = vmatprep.subr.mxu0 0.0
  %300 = vmatpush1.msra.mxu0 0.0
  %301 = vmatprep.subr.mxu0 0.0
  %302 = vmatpush1.msra.mxu0 0.0
  %303 = vmatprep.subr.mxu0 0.0
  %304 = vmatpush1.msra.mxu0 0.0
  %305 = vmatprep.subr.mxu0 0.0
  %306 = vmatpush1.msra.mxu0 0.0
  %307 = vmatprep.subr.mxu0 0.0
  %308 = vmatpush1.msra.mxu0 0.0
  %309 = vmatprep.subr.mxu0 0.0
  %310 = vmatpush1.msra.mxu0 0.0
  %311 = vmatprep.subr.mxu0 0.0
  %312 = vmatpush1.msra.mxu0 0.0
  %313 = vmatprep.subr.mxu0 0.0
  %314 = vmatpush1.msra.mxu0 0.0
  %315 = vmatprep.subr.mxu0 0.0
  %316 = vmatpush1.msra.mxu0 0.0
  %317 = vmatprep.subr.mxu0 0.0
  %318 = vmatpush1.msra.mxu0 0.0
  %319 = vmatprep.subr.mxu0 0.0
  %320 = vmatpush1.msra.mxu0 0.0
  %321 = vmatprep.subr.mxu0 0.0
  %322 = vmatpush1.msra.mxu0 0.0
  %323 = vmatprep.subr.mxu0 0.0
  %324 = vmatpush1.msra.mxu0 0.0
  %325 = vmatprep.subr.mxu0 0.0
  %326 = vmatpush1.msra.mxu0 0.0
  %327 = vmatprep.subr.mxu0 0.0
  %328 = vmatpush1.msra.mxu0 0.0
  %329 = vmatprep.subr.mxu0 0.0
  %330 = vmatpush1.msra.mxu0 0.0
  %331 = vmatprep.subr.mxu0 0.0
  %332 = vmatpush1.msra.mxu0 0.0
  %333 = vmatprep.subr.mxu0 0.0
  %334 = vmatpush1.msra.mxu0 0.0
  %335 = vmatprep.subr.mxu0 0.0
  %336 = vmatpush1.msra.mxu0 0.0
  %337 = vmatprep.subr.mxu0 0.0
  %338 = vmatpush1.msra.mxu0 0.0
  %339 = vmatprep.subr.mxu0 0.0
  %340 = vmatpush1.msra.mxu0 0.0
  %341 = vmatprep.subr.mxu0 0.0
  %342 = vmatpush1.msra.mxu0 0.0
  %343 = vmatprep.subr.mxu0 0.0
  %344 = vmatpush1.msra.mxu0 0.0
  %345 = vmatprep.subr.mxu0 0.0
  %346 = vmatpush1.msra.mxu0 0.0
  %347 = vmatprep.subr.mxu0 0.0
  %348 = vmatpush1.msra.mxu0 0.0
  %349 = vmatprep.subr.mxu0 0.0
  %350 = vmatpush1.msra.mxu0 0.0
  %351 = vmatprep.mubr.f32.mxu0 0.0
  %352 = vmatmul.mubr.f32.gmra.mrb[0].mxu0 %v285
  %v353 = vpop.f32.mrb[0].mxu0
  %v354 = vadd.f32 0.0, %v353
  %v355 = vpop.f32.mrb[0].mxu0
  %356 = vdwg.mxu0
  %v357 = vadd.f32 %v88, %v354
  %v358 = vadd.f32 %v357, %v256
  %v359 = vxor.u32 %v358, 2147483648
  %v360 = vmul.f32 %v359, 1.442695
  %v361 = vpow.pop %v360
  %v362 = vadd.f32 %v361, 1.0
  %v363 = vrcp.pop %v362
  %v364 = vmul.f32 1.0, %v363
  %v365 = vtanh.pop %v358
  %v366 = vmul.f32 %v364, %v275
  %368 = vrot.lane.b32.xlu0 %v365, 64
  %v369 = vpop.permute.xlu0 %368
  %v371 = vmul.f32 %v364, %v369
  %373 = vrot.lane.b32.xlu0 %v371, 32
  %v374 = vpop.permute.xlu0 %373
  %v376 = vadd.f32 %v366, %v374
  %v377 = vtanh.pop %v376
  %379 = vrot.lane.b32.xlu0 %v377, 64
  %v380 = vpop.permute.xlu0 %379
  %v382 = vmul.f32 %v364, %v380
  %384 = vrot.lane.b32.xlu0 %v382, 32
  %v385 = vpop.permute.xlu0 %384
  %v386 = vsel %vm178, %v385, 0
  %388 = vmatprep.subr.mxu0 0.0
  %389 = vmatpush1.msra.mxu0 %v173
  %390 = vmatprep.subr.mxu0 0.0
  %391 = vmatpush1.msra.mxu0 %v174
  %392 = vmatprep.subr.mxu0 0.0
  %393 = vmatpush1.msra.mxu0 %v175
  %394 = vmatprep.subr.mxu0 0.0
  %395 = vmatpush1.msra.mxu0 %v176
  %396 = vmatprep.subr.mxu0 0.0
  %397 = vmatpush1.msra.mxu0 0.0
  %398 = vmatprep.subr.mxu0 0.0
  %399 = vmatpush1.msra.mxu0 0.0
  %400 = vmatprep.subr.mxu0 0.0
  %401 = vmatpush1.msra.mxu0 0.0
  %402 = vmatprep.subr.mxu0 0.0
  %403 = vmatpush1.msra.mxu0 0.0
  %404 = vmatprep.subr.mxu0 0.0
  %405 = vmatpush1.msra.mxu0 0.0
  %406 = vmatprep.subr.mxu0 0.0
  %407 = vmatpush1.msra.mxu0 0.0
  %408 = vmatprep.subr.mxu0 0.0
  %409 = vmatpush1.msra.mxu0 0.0
  %410 = vmatprep.subr.mxu0 0.0
  %411 = vmatpush1.msra.mxu0 0.0
  %412 = vmatprep.subr.mxu0 0.0
  %413 = vmatpush1.msra.mxu0 0.0
  %414 = vmatprep.subr.mxu0 0.0
  %415 = vmatpush1.msra.mxu0 0.0
  %416 = vmatprep.subr.mxu0 0.0
  %417 = vmatpush1.msra.mxu0 0.0
  %418 = vmatprep.subr.mxu0 0.0
  %419 = vmatpush1.msra.mxu0 0.0
  %420 = vmatprep.subr.mxu0 0.0
  %421 = vmatpush1.msra.mxu0 0.0
  %422 = vmatprep.subr.mxu0 0.0
  %423 = vmatpush1.msra.mxu0 0.0
  %424 = vmatprep.subr.mxu0 0.0
  %425 = vmatpush1.msra.mxu0 0.0
  %426 = vmatprep.subr.mxu0 0.0
  %427 = vmatpush1.msra.mxu0 0.0
  %428 = vmatprep.subr.mxu0 0.0
  %429 = vmatpush1.msra.mxu0 0.0
  %430 = vmatprep.subr.mxu0 0.0
  %431 = vmatpush1.msra.mxu0 0.0
  %432 = vmatprep.subr.mxu0 0.0
  %433 = vmatpush1.msra.mxu0 0.0
  %434 = vmatprep.subr.mxu0 0.0
  %435 = vmatpush1.msra.mxu0 0.0
  %436 = vmatprep.subr.mxu0 0.0
  %437 = vmatpush1.msra.mxu0 0.0
  %438 = vmatprep.subr.mxu0 0.0
  %439 = vmatpush1.msra.mxu0 0.0
  %440 = vmatprep.subr.mxu0 0.0
  %441 = vmatpush1.msra.mxu0 0.0
  %442 = vmatprep.subr.mxu0 0.0
  %443 = vmatpush1.msra.mxu0 0.0
  %444 = vmatprep.subr.mxu0 0.0
  %445 = vmatpush1.msra.mxu0 0.0
  %446 = vmatprep.subr.mxu0 0.0
  %447 = vmatpush1.msra.mxu0 0.0
  %448 = vmatprep.subr.mxu0 0.0
  %449 = vmatpush1.msra.mxu0 0.0
  %450 = vmatprep.subr.mxu0 0.0
  %451 = vmatpush1.msra.mxu0 0.0
  %452 = vmatprep.mubr.f32.mxu0 0.0
  %453 = vmatmul.mubr.f32.gmra.mrb[0].mxu0 %v386
  %v454 = vpop.f32.mrb[0].mxu0
  %v455 = vadd.f32 0.0, %v454
  %v456 = vpop.f32.mrb[0].mxu0
  %457 = vdwg.mxu0
  %v458 = vadd.f32 %v89, %v455
  %v459 = vadd.f32 %v458, %v256
  %v460 = vxor.u32 %v459, 2147483648
  %v461 = vmul.f32 %v460, 1.442695
  %v462 = vpow.pop %v461
  %v463 = vadd.f32 %v462, 1.0
  %v464 = vrcp.pop %v463
  %v465 = vmul.f32 1.0, %v464
  %v466 = vtanh.pop %v459
  %v467 = vmul.f32 %v465, %v376
  %469 = vrot.lane.b32.xlu0 %v466, 64
  %v470 = vpop.permute.xlu0 %469
  %v472 = vmul.f32 %v465, %v470
  %474 = vrot.lane.b32.xlu0 %v472, 32
  %v475 = vpop.permute.xlu0 %474
  %v477 = vadd.f32 %v467, %v475
  %v478 = vtanh.pop %v477
  %480 = vrot.lane.b32.xlu0 %v478, 64
  %v481 = vpop.permute.xlu0 %480
  %v483 = vmul.f32 %v465, %v481
  %485 = vrot.lane.b32.xlu0 %v483, 32
  %v486 = vpop.permute.xlu0 %485
  %v487 = vsel %vm178, %v486, 0
  %489 = vmatprep.subr.mxu0 0.0
  %490 = vmatpush1.msra.mxu0 %v173
  %491 = vmatprep.subr.mxu0 0.0
  %492 = vmatpush1.msra.mxu0 %v174
  %493 = vmatprep.subr.mxu0 0.0
  %494 = vmatpush1.msra.mxu0 %v175
  %495 = vmatprep.subr.mxu0 0.0
  %496 = vmatpush1.msra.mxu0 %v176
  %497 = vmatprep.subr.mxu0 0.0
  %498 = vmatpush1.msra.mxu0 0.0
  %499 = vmatprep.subr.mxu0 0.0
  %500 = vmatpush1.msra.mxu0 0.0
  %501 = vmatprep.subr.mxu0 0.0
  %502 = vmatpush1.msra.mxu0 0.0
  %503 = vmatprep.subr.mxu0 0.0
  %504 = vmatpush1.msra.mxu0 0.0
  %505 = vmatprep.subr.mxu0 0.0
  %506 = vmatpush1.msra.mxu0 0.0
  %507 = vmatprep.subr.mxu0 0.0
  %508 = vmatpush1.msra.mxu0 0.0
  %509 = vmatprep.subr.mxu0 0.0
  %510 = vmatpush1.msra.mxu0 0.0
  %511 = vmatprep.subr.mxu0 0.0
  %512 = vmatpush1.msra.mxu0 0.0
  %513 = vmatprep.subr.mxu0 0.0
  %514 = vmatpush1.msra.mxu0 0.0
  %515 = vmatprep.subr.mxu0 0.0
  %516 = vmatpush1.msra.mxu0 0.0
  %517 = vmatprep.subr.mxu0 0.0
  %518 = vmatpush1.msra.mxu0 0.0
  %519 = vmatprep.subr.mxu0 0.0
  %520 = vmatpush1.msra.mxu0 0.0
  %521 = vmatprep.subr.mxu0 0.0
  %522 = vmatpush1.msra.mxu0 0.0
  %523 = vmatprep.subr.mxu0 0.0
  %524 = vmatpush1.msra.mxu0 0.0
  %525 = vmatprep.subr.mxu0 0.0
  %526 = vmatpush1.msra.mxu0 0.0
  %527 = vmatprep.subr.mxu0 0.0
  %528 = vmatpush1.msra.mxu0 0.0
  %529 = vmatprep.subr.mxu0 0.0
  %530 = vmatpush1.msra.mxu0 0.0
  %531 = vmatprep.subr.mxu0 0.0
  %532 = vmatpush1.msra.mxu0 0.0
  %533 = vmatprep.subr.mxu0 0.0
  %534 = vmatpush1.msra.mxu0 0.0
  %535 = vmatprep.subr.mxu0 0.0
  %536 = vmatpush1.msra.mxu0 0.0
  %537 = vmatprep.subr.mxu0 0.0
  %538 = vmatpush1.msra.mxu0 0.0
  %539 = vmatprep.subr.mxu0 0.0
  %540 = vmatpush1.msra.mxu0 0.0
  %541 = vmatprep.subr.mxu0 0.0
  %542 = vmatpush1.msra.mxu0 0.0
  %543 = vmatprep.subr.mxu0 0.0
  %544 = vmatpush1.msra.mxu0 0.0
  %545 = vmatprep.subr.mxu0 0.0
  %546 = vmatpush1.msra.mxu0 0.0
  %547 = vmatprep.subr.mxu0 0.0
  %548 = vmatpush1.msra.mxu0 0.0
  %549 = vmatprep.subr.mxu0 0.0
  %550 = vmatpush1.msra.mxu0 0.0
  %551 = vmatprep.subr.mxu0 0.0
  %552 = vmatpush1.msra.mxu0 0.0
  %553 = vmatprep.mubr.f32.mxu0 0.0
  %554 = vmatmul.mubr.f32.gmra.mrb[0].mxu0 %v487
  %v555 = vpop.f32.mrb[0].mxu0
  %v556 = vadd.f32 0.0, %v555
  %v557 = vpop.f32.mrb[0].mxu0
  %558 = vdwg.mxu0
  %v559 = vadd.f32 %v90, %v556
  %v560 = vadd.f32 %v559, %v256
  %v561 = vxor.u32 %v560, 2147483648
  %v562 = vmul.f32 %v561, 1.442695
  %v563 = vpow.pop %v562
  %v564 = vadd.f32 %v563, 1.0
  %v565 = vrcp.pop %v564
  %v566 = vmul.f32 1.0, %v565
  %v567 = vtanh.pop %v560
  %v568 = vmul.f32 %v566, %v477
  %570 = vrot.lane.b32.xlu0 %v567, 64
  %v571 = vpop.permute.xlu0 %570
  %v573 = vmul.f32 %v566, %v571
  %575 = vrot.lane.b32.xlu0 %v573, 32
  %v576 = vpop.permute.xlu0 %575
  %v578 = vadd.f32 %v568, %v576
  %v579 = vtanh.pop %v578
  %581 = vrot.lane.b32.xlu0 %v579, 64
  %v582 = vpop.permute.xlu0 %581
  %v584 = vmul.f32 %v566, %v582
  %586 = vrot.lane.b32.xlu0 %v584, 32
  %v587 = vpop.permute.xlu0 %586
  %v588 = vsel %vm178, %v587, 0
  %590 = vmatprep.subr.mxu0 0.0
  %591 = vmatpush1.msra.mxu0 %v173
  %592 = vmatprep.subr.mxu0 0.0
  %593 = vmatpush1.msra.mxu0 %v174
  %594 = vmatprep.subr.mxu0 0.0
  %595 = vmatpush1.msra.mxu0 %v175
  %596 = vmatprep.subr.mxu0 0.0
  %597 = vmatpush1.msra.mxu0 %v176
  %598 = vmatprep.subr.mxu0 0.0
  %599 = vmatpush1.msra.mxu0 0.0
  %600 = vmatprep.subr.mxu0 0.0
  %601 = vmatpush1.msra.mxu0 0.0
  %602 = vmatprep.subr.mxu0 0.0
  %603 = vmatpush1.msra.mxu0 0.0
  %604 = vmatprep.subr.mxu0 0.0
  %605 = vmatpush1.msra.mxu0 0.0
  %606 = vmatprep.subr.mxu0 0.0
  %607 = vmatpush1.msra.mxu0 0.0
  %608 = vmatprep.subr.mxu0 0.0
  %609 = vmatpush1.msra.mxu0 0.0
  %610 = vmatprep.subr.mxu0 0.0
  %611 = vmatpush1.msra.mxu0 0.0
  %612 = vmatprep.subr.mxu0 0.0
  %613 = vmatpush1.msra.mxu0 0.0
  %614 = vmatprep.subr.mxu0 0.0
  %615 = vmatpush1.msra.mxu0 0.0
  %616 = vmatprep.subr.mxu0 0.0
  %617 = vmatpush1.msra.mxu0 0.0
  %618 = vmatprep.subr.mxu0 0.0
  %619 = vmatpush1.msra.mxu0 0.0
  %620 = vmatprep.subr.mxu0 0.0
  %621 = vmatpush1.msra.mxu0 0.0
  %622 = vmatprep.subr.mxu0 0.0
  %623 = vmatpush1.msra.mxu0 0.0
  %624 = vmatprep.subr.mxu0 0.0
  %625 = vmatpush1.msra.mxu0 0.0
  %626 = vmatprep.subr.mxu0 0.0
  %627 = vmatpush1.msra.mxu0 0.0
  %628 = vmatprep.subr.mxu0 0.0
  %629 = vmatpush1.msra.mxu0 0.0
  %630 = vmatprep.subr.mxu0 0.0
  %631 = vmatpush1.msra.mxu0 0.0
  %632 = vmatprep.subr.mxu0 0.0
  %633 = vmatpush1.msra.mxu0 0.0
  %634 = vmatprep.subr.mxu0 0.0
  %635 = vmatpush1.msra.mxu0 0.0
  %636 = vmatprep.subr.mxu0 0.0
  %637 = vmatpush1.msra.mxu0 0.0
  %638 = vmatprep.subr.mxu0 0.0
  %639 = vmatpush1.msra.mxu0 0.0
  %640 = vmatprep.subr.mxu0 0.0
  %641 = vmatpush1.msra.mxu0 0.0
  %642 = vmatprep.subr.mxu0 0.0
  %643 = vmatpush1.msra.mxu0 0.0
  %644 = vmatprep.subr.mxu0 0.0
  %645 = vmatpush1.msra.mxu0 0.0
  %646 = vmatprep.subr.mxu0 0.0
  %647 = vmatpush1.msra.mxu0 0.0
  %648 = vmatprep.subr.mxu0 0.0
  %649 = vmatpush1.msra.mxu0 0.0
  %650 = vmatprep.subr.mxu0 0.0
  %651 = vmatpush1.msra.mxu0 0.0
  %652 = vmatprep.subr.mxu0 0.0
  %653 = vmatpush1.msra.mxu0 0.0
  %654 = vmatprep.mubr.f32.mxu0 0.0
  %655 = vmatmul.mubr.f32.gmra.mrb[0].mxu0 %v588
  %v656 = vpop.f32.mrb[0].mxu0
  %v657 = vadd.f32 0.0, %v656
  %v658 = vpop.f32.mrb[0].mxu0
  %659 = vdwg.mxu0
  %v660 = vadd.f32 %v91, %v657
  %v661 = vadd.f32 %v660, %v256
  %v662 = vxor.u32 %v661, 2147483648
  %v663 = vmul.f32 %v662, 1.442695
  %v664 = vpow.pop %v663
  %v665 = vadd.f32 %v664, 1.0
  %v666 = vrcp.pop %v665
  %v667 = vmul.f32 1.0, %v666
  %v668 = vtanh.pop %v661
  %v669 = vmul.f32 %v667, %v578
  %671 = vrot.lane.b32.xlu0 %v668, 64
  %v672 = vpop.permute.xlu0 %671
  %v674 = vmul.f32 %v667, %v672
  %676 = vrot.lane.b32.xlu0 %v674, 32
  %v677 = vpop.permute.xlu0 %676
  %v679 = vadd.f32 %v669, %v677
  %v680 = vtanh.pop %v679
  %682 = vrot.lane.b32.xlu0 %v680, 64
  %v683 = vpop.permute.xlu0 %682
  %v685 = vmul.f32 %v667, %v683
  %687 = vrot.lane.b32.xlu0 %v685, 32
  %v688 = vpop.permute.xlu0 %687
  %v689 = vsel %vm178, %v688, 0
  %691 = vmatprep.subr.mxu0 0.0
  %692 = vmatpush1.msra.mxu0 %v173
  %693 = vmatprep.subr.mxu0 0.0
  %694 = vmatpush1.msra.mxu0 %v174
  %695 = vmatprep.subr.mxu0 0.0
  %696 = vmatpush1.msra.mxu0 %v175
  %697 = vmatprep.subr.mxu0 0.0
  %698 = vmatpush1.msra.mxu0 %v176
  %699 = vmatprep.subr.mxu0 0.0
  %700 = vmatpush1.msra.mxu0 0.0
  %701 = vmatprep.subr.mxu0 0.0
  %702 = vmatpush1.msra.mxu0 0.0
  %703 = vmatprep.subr.mxu0 0.0
  %704 = vmatpush1.msra.mxu0 0.0
  %705 = vmatprep.subr.mxu0 0.0
  %706 = vmatpush1.msra.mxu0 0.0
  %707 = vmatprep.subr.mxu0 0.0
  %708 = vmatpush1.msra.mxu0 0.0
  %709 = vmatprep.subr.mxu0 0.0
  %710 = vmatpush1.msra.mxu0 0.0
  %711 = vmatprep.subr.mxu0 0.0
  %712 = vmatpush1.msra.mxu0 0.0
  %713 = vmatprep.subr.mxu0 0.0
  %714 = vmatpush1.msra.mxu0 0.0
  %715 = vmatprep.subr.mxu0 0.0
  %716 = vmatpush1.msra.mxu0 0.0
  %717 = vmatprep.subr.mxu0 0.0
  %718 = vmatpush1.msra.mxu0 0.0
  %719 = vmatprep.subr.mxu0 0.0
  %720 = vmatpush1.msra.mxu0 0.0
  %721 = vmatprep.subr.mxu0 0.0
  %722 = vmatpush1.msra.mxu0 0.0
  %723 = vmatprep.subr.mxu0 0.0
  %724 = vmatpush1.msra.mxu0 0.0
  %725 = vmatprep.subr.mxu0 0.0
  %726 = vmatpush1.msra.mxu0 0.0
  %727 = vmatprep.subr.mxu0 0.0
  %728 = vmatpush1.msra.mxu0 0.0
  %729 = vmatprep.subr.mxu0 0.0
  %730 = vmatpush1.msra.mxu0 0.0
  %731 = vmatprep.subr.mxu0 0.0
  %732 = vmatpush1.msra.mxu0 0.0
  %733 = vmatprep.subr.mxu0 0.0
  %734 = vmatpush1.msra.mxu0 0.0
  %735 = vmatprep.subr.mxu0 0.0
  %736 = vmatpush1.msra.mxu0 0.0
  %737 = vmatprep.subr.mxu0 0.0
  %738 = vmatpush1.msra.mxu0 0.0
  %739 = vmatprep.subr.mxu0 0.0
  %740 = vmatpush1.msra.mxu0 0.0
  %741 = vmatprep.subr.mxu0 0.0
  %742 = vmatpush1.msra.mxu0 0.0
  %743 = vmatprep.subr.mxu0 0.0
  %744 = vmatpush1.msra.mxu0 0.0
  %745 = vmatprep.subr.mxu0 0.0
  %746 = vmatpush1.msra.mxu0 0.0
  %747 = vmatprep.subr.mxu0 0.0
  %748 = vmatpush1.msra.mxu0 0.0
  %749 = vmatprep.subr.mxu0 0.0
  %750 = vmatpush1.msra.mxu0 0.0
  %751 = vmatprep.subr.mxu0 0.0
  %752 = vmatpush1.msra.mxu0 0.0
  %753 = vmatprep.subr.mxu0 0.0
  %754 = vmatpush1.msra.mxu0 0.0
  %755 = vmatprep.mubr.f32.mxu0 0.0
  %756 = vmatmul.mubr.f32.gmra.mrb[0].mxu0 %v689
  %v757 = vpop.f32.mrb[0].mxu0
  %v758 = vadd.f32 0.0, %v757
  %v759 = vpop.f32.mrb[0].mxu0
  %760 = vdwg.mxu0
  %v761 = vadd.f32 %v92, %v758
  %v762 = vadd.f32 %v761, %v256
  %v763 = vxor.u32 %v762, 2147483648
  %v764 = vmul.f32 %v763, 1.442695
  %v765 = vpow.pop %v764
  %v766 = vadd.f32 %v765, 1.0
  %v767 = vrcp.pop %v766
  %v768 = vmul.f32 1.0, %v767
  %v769 = vtanh.pop %v762
  %v770 = vmul.f32 %v768, %v679
  %772 = vrot.lane.b32.xlu0 %v769, 64
  %v773 = vpop.permute.xlu0 %772
  %v775 = vmul.f32 %v768, %v773
  %777 = vrot.lane.b32.xlu0 %v775, 32
  %v778 = vpop.permute.xlu0 %777
  %v780 = vadd.f32 %v770, %v778
  %v781 = vtanh.pop %v780
  %783 = vrot.lane.b32.xlu0 %v781, 64
  %v784 = vpop.permute.xlu0 %783
  %v786 = vmul.f32 %v768, %v784
  %788 = vrot.lane.b32.xlu0 %v786, 32
  %v789 = vpop.permute.xlu0 %788
  %v790 = vsel %vm178, %v789, 0
  %792 = vmatprep.subr.mxu0 0.0
  %793 = vmatpush1.msra.mxu0 %v173
  %794 = vmatprep.subr.mxu0 0.0
  %795 = vmatpush1.msra.mxu0 %v174
  %796 = vmatprep.subr.mxu0 0.0
  %797 = vmatpush1.msra.mxu0 %v175
  %798 = vmatprep.subr.mxu0 0.0
  %799 = vmatpush1.msra.mxu0 %v176
  %800 = vmatprep.subr.mxu0 0.0
  %801 = vmatpush1.msra.mxu0 0.0
  %802 = vmatprep.subr.mxu0 0.0
  %803 = vmatpush1.msra.mxu0 0.0
  %804 = vmatprep.subr.mxu0 0.0
  %805 = vmatpush1.msra.mxu0 0.0
  %806 = vmatprep.subr.mxu0 0.0
  %807 = vmatpush1.msra.mxu0 0.0
  %808 = vmatprep.subr.mxu0 0.0
  %809 = vmatpush1.msra.mxu0 0.0
  %810 = vmatprep.subr.mxu0 0.0
  %811 = vmatpush1.msra.mxu0 0.0
  %812 = vmatprep.subr.mxu0 0.0
  %813 = vmatpush1.msra.mxu0 0.0
  %814 = vmatprep.subr.mxu0 0.0
  %815 = vmatpush1.msra.mxu0 0.0
  %816 = vmatprep.subr.mxu0 0.0
  %817 = vmatpush1.msra.mxu0 0.0
  %818 = vmatprep.subr.mxu0 0.0
  %819 = vmatpush1.msra.mxu0 0.0
  %820 = vmatprep.subr.mxu0 0.0
  %821 = vmatpush1.msra.mxu0 0.0
  %822 = vmatprep.subr.mxu0 0.0
  %823 = vmatpush1.msra.mxu0 0.0
  %824 = vmatprep.subr.mxu0 0.0
  %825 = vmatpush1.msra.mxu0 0.0
  %826 = vmatprep.subr.mxu0 0.0
  %827 = vmatpush1.msra.mxu0 0.0
  %828 = vmatprep.subr.mxu0 0.0
  %829 = vmatpush1.msra.mxu0 0.0
  %830 = vmatprep.subr.mxu0 0.0
  %831 = vmatpush1.msra.mxu0 0.0
  %832 = vmatprep.subr.mxu0 0.0
  %833 = vmatpush1.msra.mxu0 0.0
  %834 = vmatprep.subr.mxu0 0.0
  %835 = vmatpush1.msra.mxu0 0.0
  %836 = vmatprep.subr.mxu0 0.0
  %837 = vmatpush1.msra.mxu0 0.0
  %838 = vmatprep.subr.mxu0 0.0
  %839 = vmatpush1.msra.mxu0 0.0
  %840 = vmatprep.subr.mxu0 0.0
  %841 = vmatpush1.msra.mxu0 0.0
  %842 = vmatprep.subr.mxu0 0.0
  %843 = vmatpush1.msra.mxu0 0.0
  %844 = vmatprep.subr.mxu0 0.0
  %845 = vmatpush1.msra.mxu0 0.0
  %846 = vmatprep.subr.mxu0 0.0
  %847 = vmatpush1.msra.mxu0 0.0
  %848 = vmatprep.subr.mxu0 0.0
  %849 = vmatpush1.msra.mxu0 0.0
  %850 = vmatprep.subr.mxu0 0.0
  %851 = vmatpush1.msra.mxu0 0.0
  %852 = vmatprep.subr.mxu0 0.0
  %853 = vmatpush1.msra.mxu0 0.0
  %854 = vmatprep.subr.mxu0 0.0
  %855 = vmatpush1.msra.mxu0 0.0
  %856 = vmatprep.mubr.f32.mxu0 0.0
  %857 = vmatmul.mubr.f32.gmra.mrb[0].mxu0 %v790
  %v858 = vpop.f32.mrb[0].mxu0
  %v859 = vadd.f32 0.0, %v858
  %v860 = vpop.f32.mrb[0].mxu0
  %861 = vdwg.mxu0
  %v862 = vadd.f32 %v93, %v859
  %v863 = vadd.f32 %v862, %v256
  %v864 = vxor.u32 %v863, 2147483648
  %v865 = vmul.f32 %v864, 1.442695
  %v866 = vpow.pop %v865
  %v867 = vadd.f32 %v866, 1.0
  %v868 = vrcp.pop %v867
  %v869 = vmul.f32 1.0, %v868
  %v870 = vtanh.pop %v863
  %v871 = vmul.f32 %v869, %v780
  %873 = vrot.lane.b32.xlu0 %v870, 64
  %v874 = vpop.permute.xlu0 %873
  %v876 = vmul.f32 %v869, %v874
  %878 = vrot.lane.b32.xlu0 %v876, 32
  %v879 = vpop.permute.xlu0 %878
  %v881 = vadd.f32 %v871, %v879
  %v882 = vtanh.pop %v881
  %884 = vrot.lane.b32.xlu0 %v882, 64
  %v885 = vpop.permute.xlu0 %884
  %v887 = vmul.f32 %v869, %v885
  %889 = vrot.lane.b32.xlu0 %v887, 32
  %v890 = vpop.permute.xlu0 %889
  %v891 = vsel %vm178, %v890, 0
  %893 = vmatprep.subr.mxu0 0.0
  %894 = vmatpush1.msra.mxu0 %v173
  %895 = vmatprep.subr.mxu0 0.0
  %896 = vmatpush1.msra.mxu0 %v174
  %897 = vmatprep.subr.mxu0 0.0
  %898 = vmatpush1.msra.mxu0 %v175
  %899 = vmatprep.subr.mxu0 0.0
  %900 = vmatpush1.msra.mxu0 %v176
  %901 = vmatprep.subr.mxu0 0.0
  %902 = vmatpush1.msra.mxu0 0.0
  %903 = vmatprep.subr.mxu0 0.0
  %904 = vmatpush1.msra.mxu0 0.0
  %905 = vmatprep.subr.mxu0 0.0
  %906 = vmatpush1.msra.mxu0 0.0
  %907 = vmatprep.subr.mxu0 0.0
  %908 = vmatpush1.msra.mxu0 0.0
  %909 = vmatprep.subr.mxu0 0.0
  %910 = vmatpush1.msra.mxu0 0.0
  %911 = vmatprep.subr.mxu0 0.0
  %912 = vmatpush1.msra.mxu0 0.0
  %913 = vmatprep.subr.mxu0 0.0
  %914 = vmatpush1.msra.mxu0 0.0
  %915 = vmatprep.subr.mxu0 0.0
  %916 = vmatpush1.msra.mxu0 0.0
  %917 = vmatprep.subr.mxu0 0.0
  %918 = vmatpush1.msra.mxu0 0.0
  %919 = vmatprep.subr.mxu0 0.0
  %920 = vmatpush1.msra.mxu0 0.0
  %921 = vmatprep.subr.mxu0 0.0
  %922 = vmatpush1.msra.mxu0 0.0
  %923 = vmatprep.subr.mxu0 0.0
  %924 = vmatpush1.msra.mxu0 0.0
  %925 = vmatprep.subr.mxu0 0.0
  %926 = vmatpush1.msra.mxu0 0.0
  %927 = vmatprep.subr.mxu0 0.0
  %928 = vmatpush1.msra.mxu0 0.0
  %929 = vmatprep.subr.mxu0 0.0
  %930 = vmatpush1.msra.mxu0 0.0
  %931 = vmatprep.subr.mxu0 0.0
  %932 = vmatpush1.msra.mxu0 0.0
  %933 = vmatprep.subr.mxu0 0.0
  %934 = vmatpush1.msra.mxu0 0.0
  %935 = vmatprep.subr.mxu0 0.0
  %936 = vmatpush1.msra.mxu0 0.0
  %937 = vmatprep.subr.mxu0 0.0
  %938 = vmatpush1.msra.mxu0 0.0
  %939 = vmatprep.subr.mxu0 0.0
  %940 = vmatpush1.msra.mxu0 0.0
  %941 = vmatprep.subr.mxu0 0.0
  %942 = vmatpush1.msra.mxu0 0.0
  %943 = vmatprep.subr.mxu0 0.0
  %944 = vmatpush1.msra.mxu0 0.0
  %945 = vmatprep.subr.mxu0 0.0
  %946 = vmatpush1.msra.mxu0 0.0
  %947 = vmatprep.subr.mxu0 0.0
  %948 = vmatpush1.msra.mxu0 0.0
  %949 = vmatprep.subr.mxu0 0.0
  %950 = vmatpush1.msra.mxu0 0.0
  %951 = vmatprep.subr.mxu0 0.0
  %952 = vmatpush1.msra.mxu0 0.0
  %953 = vmatprep.subr.mxu0 0.0
  %954 = vmatpush1.msra.mxu0 0.0
  %955 = vmatprep.subr.mxu0 0.0
  %956 = vmatpush1.msra.mxu0 0.0
  %957 = vmatprep.mubr.f32.mxu0 0.0
  %958 = vmatmul.mubr.f32.gmra.mrb[0].mxu0 %v891
  %v959 = vpop.f32.mrb[0].mxu0
  %v960 = vadd.f32 0.0, %v959
  %v961 = vpop.f32.mrb[0].mxu0
  %962 = vdwg.mxu0
  %v963 = vadd.f32 %v94, %v960
  %v964 = vadd.f32 %v963, %v256
  %v965 = vxor.u32 %v964, 2147483648
  %v966 = vmul.f32 %v965, 1.442695
  %v967 = vpow.pop %v966
  %v968 = vadd.f32 %v967, 1.0
  %v969 = vrcp.pop %v968
  %v970 = vmul.f32 1.0, %v969
  %v971 = vtanh.pop %v964
  %v972 = vmul.f32 %v970, %v881
  %974 = vrot.lane.b32.xlu0 %v971, 64
  %v975 = vpop.permute.xlu0 %974
  %v977 = vmul.f32 %v970, %v975
  %979 = vrot.lane.b32.xlu0 %v977, 32
  %v980 = vpop.permute.xlu0 %979
  %v982 = vadd.f32 %v972, %v980
  %v983 = vtanh.pop %v982
  %985 = vrot.lane.b32.xlu0 %v983, 64
  %v986 = vpop.permute.xlu0 %985
  %v988 = vmul.f32 %v970, %v986
  %v989 = vld [vmem:[%s1 + $0x20] sm:$0xff]
  %v990 = vld [vmem:[%s1 + $0x28] sm:$0xff]
  %v991 = vld [vmem:[%s1 + $0x30] sm:$0xff]
  %v992 = vld [vmem:[%s1 + $0x38] sm:$0xff]
  %v993 = vld [vmem:[%s1 + $0x62] sm:$0x1]
  %v994 = vld [vmem:[%s1 + $0x40] sm:$0xff]
  %v995 = vld [vmem:[%s1 + $0x48] sm:$0xff]
  %v996 = vld [vmem:[%s1 + $0x50] sm:$0xff]
  %v997 = vld [vmem:[%s1 + $0x58] sm:$0xff]
  %998 = vmatprep.subr.mxu0 0.0
  %999 = vmatpush1.msra.mxu0 %v989
  %1000 = vmatprep.subr.mxu0 0.0
  %1001 = vmatpush1.msra.mxu0 %v990
  %1002 = vmatprep.subr.mxu0 0.0
  %1003 = vmatpush1.msra.mxu0 %v991
  %1004 = vmatprep.subr.mxu0 0.0
  %1005 = vmatpush1.msra.mxu0 %v992
  %1006 = vmatprep.subr.mxu0 0.0
  %1007 = vmatpush1.msra.mxu0 0.0
  %1008 = vmatprep.subr.mxu0 0.0
  %1009 = vmatpush1.msra.mxu0 0.0
  %1010 = vmatprep.subr.mxu0 0.0
  %1011 = vmatpush1.msra.mxu0 0.0
  %1012 = vmatprep.subr.mxu0 0.0
  %1013 = vmatpush1.msra.mxu0 0.0
  %1014 = vmatprep.subr.mxu0 0.0
  %1015 = vmatpush1.msra.mxu0 0.0
  %1016 = vmatprep.subr.mxu0 0.0
  %1017 = vmatpush1.msra.mxu0 0.0
  %1018 = vmatprep.subr.mxu0 0.0
  %1019 = vmatpush1.msra.mxu0 0.0
  %1020 = vmatprep.subr.mxu0 0.0
  %1021 = vmatpush1.msra.mxu0 0.0
  %1022 = vmatprep.subr.mxu0 0.0
  %1023 = vmatpush1.msra.mxu0 0.0
  %1024 = vmatprep.subr.mxu0 0.0
  %1025 = vmatpush1.msra.mxu0 0.0
  %1026 = vmatprep.subr.mxu0 0.0
  %1027 = vmatpush1.msra.mxu0 0.0
  %1028 = vmatprep.subr.mxu0 0.0
  %1029 = vmatpush1.msra.mxu0 0.0
  %1030 = vmatprep.subr.mxu0 0.0
  %1031 = vmatpush1.msra.mxu0 0.0
  %1032 = vmatprep.subr.mxu0 0.0
  %1033 = vmatpush1.msra.mxu0 0.0
  %1034 = vmatprep.subr.mxu0 0.0
  %1035 = vmatpush1.msra.mxu0 0.0
  %1036 = vmatprep.subr.mxu0 0.0
  %1037 = vmatpush1.msra.mxu0 0.0
  %1038 = vmatprep.subr.mxu0 0.0
  %1039 = vmatpush1.msra.mxu0 0.0
  %1040 = vmatprep.subr.mxu0 0.0
  %1041 = vmatpush1.msra.mxu0 0.0
  %1042 = vmatprep.subr.mxu0 0.0
  %1043 = vmatpush1.msra.mxu0 0.0
  %1044 = vmatprep.subr.mxu0 0.0
  %1045 = vmatpush1.msra.mxu0 0.0
  %1046 = vmatprep.subr.mxu0 0.0
  %1047 = vmatpush1.msra.mxu0 0.0
  %1048 = vmatprep.subr.mxu0 0.0
  %1049 = vmatpush1.msra.mxu0 0.0
  %1050 = vmatprep.subr.mxu0 0.0
  %1051 = vmatpush1.msra.mxu0 0.0
  %1052 = vmatprep.subr.mxu0 0.0
  %1053 = vmatpush1.msra.mxu0 0.0
  %1054 = vmatprep.subr.mxu0 0.0
  %1055 = vmatpush1.msra.mxu0 0.0
  %1056 = vmatprep.subr.mxu0 0.0
  %1057 = vmatpush1.msra.mxu0 0.0
  %1058 = vmatprep.subr.mxu0 0.0
  %1059 = vmatpush1.msra.mxu0 0.0
  %1060 = vmatprep.subr.mxu0 0.0
  %1061 = vmatpush1.msra.mxu0 0.0
  %1062 = vmatprep.mubr.f32.mxu0 0.0
  %1063 = vmatmul.mubr.f32.gmra.mrb[0].mxu0 %v180
  %v1064 = vpop.f32.mrb[0].mxu0
  %v1065 = vadd.f32 0.0, %v1064
  %v1066 = vpop.f32.mrb[0].mxu0
  %1067 = vdwg.mxu0
  %1068 = vmatprep.subr.mxu0 0.0
  %1069 = vmatpush1.msra.mxu0 %v994
  %1070 = vmatprep.subr.mxu0 0.0
  %1071 = vmatpush1.msra.mxu0 %v995
  %1072 = vmatprep.subr.mxu0 0.0
  %1073 = vmatpush1.msra.mxu0 %v996
  %1074 = vmatprep.subr.mxu0 0.0
  %1075 = vmatpush1.msra.mxu0 %v997
  %1076 = vmatprep.subr.mxu0 0.0
  %1077 = vmatpush1.msra.mxu0 0.0
  %1078 = vmatprep.subr.mxu0 0.0
  %1079 = vmatpush1.msra.mxu0 0.0
  %1080 = vmatprep.subr.mxu0 0.0
  %1081 = vmatpush1.msra.mxu0 0.0
  %1082 = vmatprep.subr.mxu0 0.0
  %1083 = vmatpush1.msra.mxu0 0.0
  %1084 = vmatprep.subr.mxu0 0.0
  %1085 = vmatpush1.msra.mxu0 0.0
  %1086 = vmatprep.subr.mxu0 0.0
  %1087 = vmatpush1.msra.mxu0 0.0
  %1088 = vmatprep.subr.mxu0 0.0
  %1089 = vmatpush1.msra.mxu0 0.0
  %1090 = vmatprep.subr.mxu0 0.0
  %1091 = vmatpush1.msra.mxu0 0.0
  %1092 = vmatprep.subr.mxu0 0.0
  %1093 = vmatpush1.msra.mxu0 0.0
  %1094 = vmatprep.subr.mxu0 0.0
  %1095 = vmatpush1.msra.mxu0 0.0
  %1096 = vmatprep.subr.mxu0 0.0
  %1097 = vmatpush1.msra.mxu0 0.0
  %1098 = vmatprep.subr.mxu0 0.0
  %1099 = vmatpush1.msra.mxu0 0.0
  %1100 = vmatprep.subr.mxu0 0.0
  %1101 = vmatpush1.msra.mxu0 0.0
  %1102 = vmatprep.subr.mxu0 0.0
  %1103 = vmatpush1.msra.mxu0 0.0
  %1104 = vmatprep.subr.mxu0 0.0
  %1105 = vmatpush1.msra.mxu0 0.0
  %1106 = vmatprep.subr.mxu0 0.0
  %1107 = vmatpush1.msra.mxu0 0.0
  %1108 = vmatprep.subr.mxu0 0.0
  %1109 = vmatpush1.msra.mxu0 0.0
  %1110 = vmatprep.subr.mxu0 0.0
  %1111 = vmatpush1.msra.mxu0 0.0
  %1112 = vmatprep.subr.mxu0 0.0
  %1113 = vmatpush1.msra.mxu0 0.0
  %1114 = vmatprep.subr.mxu0 0.0
  %1115 = vmatpush1.msra.mxu0 0.0
  %1116 = vmatprep.subr.mxu0 0.0
  %1117 = vmatpush1.msra.mxu0 0.0
  %1118 = vmatprep.subr.mxu0 0.0
  %1119 = vmatpush1.msra.mxu0 0.0
  %1120 = vmatprep.subr.mxu0 0.0
  %1121 = vmatpush1.msra.mxu0 0.0
  %1122 = vmatprep.subr.mxu0 0.0
  %1123 = vmatpush1.msra.mxu0 0.0
  %1124 = vmatprep.subr.mxu0 0.0
  %1125 = vmatpush1.msra.mxu0 0.0
  %1126 = vmatprep.subr.mxu0 0.0
  %1127 = vmatpush1.msra.mxu0 0.0
  %1128 = vmatprep.subr.mxu0 0.0
  %1129 = vmatpush1.msra.mxu0 0.0
  %1130 = vmatprep.subr.mxu0 0.0
  %1131 = vmatpush1.msra.mxu0 0.0
  %1132 = vmatprep.mubr.f32.mxu0 0.0
  %1133 = vmatmul.mubr.f32.gmra.mrb[0].mxu0 %v285
  %v1134 = vpop.f32.mrb[0].mxu0
  %v1135 = vadd.f32 %v1065, %v1134
  %v1136 = vpop.f32.mrb[0].mxu0
  %1137 = vdwg.mxu0
  %v1138 = vlaneseq
  %v1139 = vshrl.u32 %v1138, 7
  %v1140 = vsub.s32 0, %v1139
  %v1141 = vrot.slane %v993, %v1140
  %v1142 = vadd.f32 %v1135, %v1141
  %v1143 = vxor.u32 %v1142, 2147483648
  %v1144 = vmul.f32 %v1143, 1.442695
  %v1145 = vpow.pop %v1144
  %v1146 = vadd.f32 %v1145, 1.0
  %v1147 = vrcp.pop %v1146
  %v1148 = vmul.f32 1.0, %v1147
  %v1149 = vtanh.pop %v1142
  %v1150 = vmul.f32 %v1148, 0.0
  %1152 = vrot.lane.b32.xlu0 %v1149, 64
  %v1153 = vpop.permute.xlu0 %1152
  %v1155 = vmul.f32 %v1148, %v1153
  %1157 = vrot.lane.b32.xlu0 %v1155, 32
  %v1158 = vpop.permute.xlu0 %1157
  %v1160 = vadd.f32 %v1150, %v1158
  %v1161 = vtanh.pop %v1160
  %1163 = vrot.lane.b32.xlu0 %v1161, 64
  %v1164 = vpop.permute.xlu0 %1163
  %v1166 = vmul.f32 %v1148, %v1164
  %1168 = vrot.lane.b32.xlu0 %v1166, 32
  %v1169 = vpop.permute.xlu0 %1168
  %v1170 = vsel %vm178, %v1169, 0
  %1172 = vmatprep.subr.mxu0 0.0
  %1173 = vmatpush1.msra.mxu0 %v989
  %1174 = vmatprep.subr.mxu0 0.0
  %1175 = vmatpush1.msra.mxu0 %v990
  %1176 = vmatprep.subr.mxu0 0.0
  %1177 = vmatpush1.msra.mxu0 %v991
  %1178 = vmatprep.subr.mxu0 0.0
  %1179 = vmatpush1.msra.mxu0 %v992
  %1180 = vmatprep.subr.mxu0 0.0
  %1181 = vmatpush1.msra.mxu0 0.0
  %1182 = vmatprep.subr.mxu0 0.0
  %1183 = vmatpush1.msra.mxu0 0.0
  %1184 = vmatprep.subr.mxu0 0.0
  %1185 = vmatpush1.msra.mxu0 0.0
  %1186 = vmatprep.subr.mxu0 0.0
  %1187 = vmatpush1.msra.mxu0 0.0
  %1188 = vmatprep.subr.mxu0 0.0
  %1189 = vmatpush1.msra.mxu0 0.0
  %1190 = vmatprep.subr.mxu0 0.0
  %1191 = vmatpush1.msra.mxu0 0.0
  %1192 = vmatprep.subr.mxu0 0.0
  %1193 = vmatpush1.msra.mxu0 0.0
  %1194 = vmatprep.subr.mxu0 0.0
  %1195 = vmatpush1.msra.mxu0 0.0
  %1196 = vmatprep.subr.mxu0 0.0
  %1197 = vmatpush1.msra.mxu0 0.0
  %1198 = vmatprep.subr.mxu0 0.0
  %1199 = vmatpush1.msra.mxu0 0.0
  %1200 = vmatprep.subr.mxu0 0.0
  %1201 = vmatpush1.msra.mxu0 0.0
  %1202 = vmatprep.subr.mxu0 0.0
  %1203 = vmatpush1.msra.mxu0 0.0
  %1204 = vmatprep.subr.mxu0 0.0
  %1205 = vmatpush1.msra.mxu0 0.0
  %1206 = vmatprep.subr.mxu0 0.0
  %1207 = vmatpush1.msra.mxu0 0.0
  %1208 = vmatprep.subr.mxu0 0.0
  %1209 = vmatpush1.msra.mxu0 0.0
  %1210 = vmatprep.subr.mxu0 0.0
  %1211 = vmatpush1.msra.mxu0 0.0
  %1212 = vmatprep.subr.mxu0 0.0
  %1213 = vmatpush1.msra.mxu0 0.0
  %1214 = vmatprep.subr.mxu0 0.0
  %1215 = vmatpush1.msra.mxu0 0.0
  %1216 = vmatprep.subr.mxu0 0.0
  %1217 = vmatpush1.msra.mxu0 0.0
  %1218 = vmatprep.subr.mxu0 0.0
  %1219 = vmatpush1.msra.mxu0 0.0
  %1220 = vmatprep.subr.mxu0 0.0
  %1221 = vmatpush1.msra.mxu0 0.0
  %1222 = vmatprep.subr.mxu0 0.0
  %1223 = vmatpush1.msra.mxu0 0.0
  %1224 = vmatprep.subr.mxu0 0.0
  %1225 = vmatpush1.msra.mxu0 0.0
  %1226 = vmatprep.subr.mxu0 0.0
  %1227 = vmatpush1.msra.mxu0 0.0
  %1228 = vmatprep.subr.mxu0 0.0
  %1229 = vmatpush1.msra.mxu0 0.0
  %1230 = vmatprep.subr.mxu0 0.0
  %1231 = vmatpush1.msra.mxu0 0.0
  %1232 = vmatprep.subr.mxu0 0.0
  %1233 = vmatpush1.msra.mxu0 0.0
  %1234 = vmatprep.subr.mxu0 0.0
  %1235 = vmatpush1.msra.mxu0 0.0
  %1236 = vmatprep.mubr.f32.mxu0 0.0
  %1237 = vmatmul.mubr.f32.gmra.mrb[0].mxu0 %v1170
  %v1238 = vpop.f32.mrb[0].mxu0
  %v1239 = vadd.f32 0.0, %v1238
  %v1240 = vpop.f32.mrb[0].mxu0
  %1241 = vdwg.mxu0
  %1242 = vmatprep.subr.mxu0 0.0
  %1243 = vmatpush1.msra.mxu0 %v994
  %1244 = vmatprep.subr.mxu0 0.0
  %1245 = vmatpush1.msra.mxu0 %v995
  %1246 = vmatprep.subr.mxu0 0.0
  %1247 = vmatpush1.msra.mxu0 %v996
  %1248 = vmatprep.subr.mxu0 0.0
  %1249 = vmatpush1.msra.mxu0 %v997
  %1250 = vmatprep.subr.mxu0 0.0
  %1251 = vmatpush1.msra.mxu0 0.0
  %1252 = vmatprep.subr.mxu0 0.0
  %1253 = vmatpush1.msra.mxu0 0.0
  %1254 = vmatprep.subr.mxu0 0.0
  %1255 = vmatpush1.msra.mxu0 0.0
  %1256 = vmatprep.subr.mxu0 0.0
  %1257 = vmatpush1.msra.mxu0 0.0
  %1258 = vmatprep.subr.mxu0 0.0
  %1259 = vmatpush1.msra.mxu0 0.0
  %1260 = vmatprep.subr.mxu0 0.0
  %1261 = vmatpush1.msra.mxu0 0.0
  %1262 = vmatprep.subr.mxu0 0.0
  %1263 = vmatpush1.msra.mxu0 0.0
  %1264 = vmatprep.subr.mxu0 0.0
  %1265 = vmatpush1.msra.mxu0 0.0
  %1266 = vmatprep.subr.mxu0 0.0
  %1267 = vmatpush1.msra.mxu0 0.0
  %1268 = vmatprep.subr.mxu0 0.0
  %1269 = vmatpush1.msra.mxu0 0.0
  %1270 = vmatprep.subr.mxu0 0.0
  %1271 = vmatpush1.msra.mxu0 0.0
  %1272 = vmatprep.subr.mxu0 0.0
  %1273 = vmatpush1.msra.mxu0 0.0
  %1274 = vmatprep.subr.mxu0 0.0
  %1275 = vmatpush1.msra.mxu0 0.0
  %1276 = vmatprep.subr.mxu0 0.0
  %1277 = vmatpush1.msra.mxu0 0.0
  %1278 = vmatprep.subr.mxu0 0.0
  %1279 = vmatpush1.msra.mxu0 0.0
  %1280 = vmatprep.subr.mxu0 0.0
  %1281 = vmatpush1.msra.mxu0 0.0
  %1282 = vmatprep.subr.mxu0 0.0
  %1283 = vmatpush1.msra.mxu0 0.0
  %1284 = vmatprep.subr.mxu0 0.0
  %1285 = vmatpush1.msra.mxu0 0.0
  %1286 = vmatprep.subr.mxu0 0.0
  %1287 = vmatpush1.msra.mxu0 0.0
  %1288 = vmatprep.subr.mxu0 0.0
  %1289 = vmatpush1.msra.mxu0 0.0
  %1290 = vmatprep.subr.mxu0 0.0
  %1291 = vmatpush1.msra.mxu0 0.0
  %1292 = vmatprep.subr.mxu0 0.0
  %1293 = vmatpush1.msra.mxu0 0.0
  %1294 = vmatprep.subr.mxu0 0.0
  %1295 = vmatpush1.msra.mxu0 0.0
  %1296 = vmatprep.subr.mxu0 0.0
  %1297 = vmatpush1.msra.mxu0 0.0
  %1298 = vmatprep.subr.mxu0 0.0
  %1299 = vmatpush1.msra.mxu0 0.0
  %1300 = vmatprep.subr.mxu0 0.0
  %1301 = vmatpush1.msra.mxu0 0.0
  %1302 = vmatprep.subr.mxu0 0.0
  %1303 = vmatpush1.msra.mxu0 0.0
  %1304 = vmatprep.subr.mxu0 0.0
  %1305 = vmatpush1.msra.mxu0 0.0
  %1306 = vmatprep.mubr.f32.mxu0 0.0
  %1307 = vmatmul.mubr.f32.gmra.mrb[0].mxu0 %v386
  %v1308 = vpop.f32.mrb[0].mxu0
  %v1309 = vadd.f32 %v1239, %v1308
  %v1310 = vpop.f32.mrb[0].mxu0
  %1311 = vdwg.mxu0
  %v1312 = vadd.f32 %v1309, %v1141
  %v1313 = vxor.u32 %v1312, 2147483648
  %v1314 = vmul.f32 %v1313, 1.442695
  %v1315 = vpow.pop %v1314
  %v1316 = vadd.f32 %v1315, 1.0
  %v1317 = vrcp.pop %v1316
  %v1318 = vmul.f32 1.0, %v1317
  %v1319 = vtanh.pop %v1312
  %v1320 = vmul.f32 %v1318, %v1160
  %1322 = vrot.lane.b32.xlu0 %v1319, 64
  %v1323 = vpop.permute.xlu0 %1322
  %v1325 = vmul.f32 %v1318, %v1323
  %1327 = vrot.lane.b32.xlu0 %v1325, 32
  %v1328 = vpop.permute.xlu0 %1327
  %v1330 = vadd.f32 %v1320, %v1328
  %v1331 = vtanh.pop %v1330
  %1333 = vrot.lane.b32.xlu0 %v1331, 64
  %v1334 = vpop.permute.xlu0 %1333
  %v1336 = vmul.f32 %v1318, %v1334
  %1338 = vrot.lane.b32.xlu0 %v1336, 32
  %v1339 = vpop.permute.xlu0 %1338
  %v1340 = vsel %vm178, %v1339, 0
  %1342 = vmatprep.subr.mxu0 0.0
  %1343 = vmatpush1.msra.mxu0 %v989
  %1344 = vmatprep.subr.mxu0 0.0
  %1345 = vmatpush1.msra.mxu0 %v990
  %1346 = vmatprep.subr.mxu0 0.0
  %1347 = vmatpush1.msra.mxu0 %v991
  %1348 = vmatprep.subr.mxu0 0.0
  %1349 = vmatpush1.msra.mxu0 %v992
  %1350 = vmatprep.subr.mxu0 0.0
  %1351 = vmatpush1.msra.mxu0 0.0
  %1352 = vmatprep.subr.mxu0 0.0
  %1353 = vmatpush1.msra.mxu0 0.0
  %1354 = vmatprep.subr.mxu0 0.0
  %1355 = vmatpush1.msra.mxu0 0.0
  %1356 = vmatprep.subr.mxu0 0.0
  %1357 = vmatpush1.msra.mxu0 0.0
  %1358 = vmatprep.subr.mxu0 0.0
  %1359 = vmatpush1.msra.mxu0 0.0
  %1360 = vmatprep.subr.mxu0 0.0
  %1361 = vmatpush1.msra.mxu0 0.0
  %1362 = vmatprep.subr.mxu0 0.0
  %1363 = vmatpush1.msra.mxu0 0.0
  %1364 = vmatprep.subr.mxu0 0.0
  %1365 = vmatpush1.msra.mxu0 0.0
  %1366 = vmatprep.subr.mxu0 0.0
  %1367 = vmatpush1.msra.mxu0 0.0
  %1368 = vmatprep.subr.mxu0 0.0
  %1369 = vmatpush1.msra.mxu0 0.0
  %1370 = vmatprep.subr.mxu0 0.0
  %1371 = vmatpush1.msra.mxu0 0.0
  %1372 = vmatprep.subr.mxu0 0.0
  %1373 = vmatpush1.msra.mxu0 0.0
  %1374 = vmatprep.subr.mxu0 0.0
  %1375 = vmatpush1.msra.mxu0 0.0
  %1376 = vmatprep.subr.mxu0 0.0
  %1377 = vmatpush1.msra.mxu0 0.0
  %1378 = vmatprep.subr.mxu0 0.0
  %1379 = vmatpush1.msra.mxu0 0.0
  %1380 = vmatprep.subr.mxu0 0.0
  %1381 = vmatpush1.msra.mxu0 0.0
  %1382 = vmatprep.subr.mxu0 0.0
  %1383 = vmatpush1.msra.mxu0 0.0
  %1384 = vmatprep.subr.mxu0 0.0
  %1385 = vmatpush1.msra.mxu0 0.0
  %1386 = vmatprep.subr.mxu0 0.0
  %1387 = vmatpush1.msra.mxu0 0.0
  %1388 = vmatprep.subr.mxu0 0.0
  %1389 = vmatpush1.msra.mxu0 0.0
  %1390 = vmatprep.subr.mxu0 0.0
  %1391 = vmatpush1.msra.mxu0 0.0
  %1392 = vmatprep.subr.mxu0 0.0
  %1393 = vmatpush1.msra.mxu0 0.0
  %1394 = vmatprep.subr.mxu0 0.0
  %1395 = vmatpush1.msra.mxu0 0.0
  %1396 = vmatprep.subr.mxu0 0.0
  %1397 = vmatpush1.msra.mxu0 0.0
  %1398 = vmatprep.subr.mxu0 0.0
  %1399 = vmatpush1.msra.mxu0 0.0
  %1400 = vmatprep.subr.mxu0 0.0
  %1401 = vmatpush1.msra.mxu0 0.0
  %1402 = vmatprep.subr.mxu0 0.0
  %1403 = vmatpush1.msra.mxu0 0.0
  %1404 = vmatprep.subr.mxu0 0.0
  %1405 = vmatpush1.msra.mxu0 0.0
  %1406 = vmatprep.mubr.f32.mxu0 0.0
  %1407 = vmatmul.mubr.f32.gmra.mrb[0].mxu0 %v1340
  %v1408 = vpop.f32.mrb[0].mxu0
  %v1409 = vadd.f32 0.0, %v1408
  %v1410 = vpop.f32.mrb[0].mxu0
  %1411 = vdwg.mxu0
  %1412 = vmatprep.subr.mxu0 0.0
  %1413 = vmatpush1.msra.mxu0 %v994
  %1414 = vmatprep.subr.mxu0 0.0
  %1415 = vmatpush1.msra.mxu0 %v995
  %1416 = vmatprep.subr.mxu0 0.0
  %1417 = vmatpush1.msra.mxu0 %v996
  %1418 = vmatprep.subr.mxu0 0.0
  %1419 = vmatpush1.msra.mxu0 %v997
  %1420 = vmatprep.subr.mxu0 0.0
  %1421 = vmatpush1.msra.mxu0 0.0
  %1422 = vmatprep.subr.mxu0 0.0
  %1423 = vmatpush1.msra.mxu0 0.0
  %1424 = vmatprep.subr.mxu0 0.0
  %1425 = vmatpush1.msra.mxu0 0.0
  %1426 = vmatprep.subr.mxu0 0.0
  %1427 = vmatpush1.msra.mxu0 0.0
  %1428 = vmatprep.subr.mxu0 0.0
  %1429 = vmatpush1.msra.mxu0 0.0
  %1430 = vmatprep.subr.mxu0 0.0
  %1431 = vmatpush1.msra.mxu0 0.0
  %1432 = vmatprep.subr.mxu0 0.0
  %1433 = vmatpush1.msra.mxu0 0.0
  %1434 = vmatprep.subr.mxu0 0.0
  %1435 = vmatpush1.msra.mxu0 0.0
  %1436 = vmatprep.subr.mxu0 0.0
  %1437 = vmatpush1.msra.mxu0 0.0
  %1438 = vmatprep.subr.mxu0 0.0
  %1439 = vmatpush1.msra.mxu0 0.0
  %1440 = vmatprep.subr.mxu0 0.0
  %1441 = vmatpush1.msra.mxu0 0.0
  %1442 = vmatprep.subr.mxu0 0.0
  %1443 = vmatpush1.msra.mxu0 0.0
  %1444 = vmatprep.subr.mxu0 0.0
  %1445 = vmatpush1.msra.mxu0 0.0
  %1446 = vmatprep.subr.mxu0 0.0
  %1447 = vmatpush1.msra.mxu0 0.0
  %1448 = vmatprep.subr.mxu0 0.0
  %1449 = vmatpush1.msra.mxu0 0.0
  %1450 = vmatprep.subr.mxu0 0.0
  %1451 = vmatpush1.msra.mxu0 0.0
  %1452 = vmatprep.subr.mxu0 0.0
  %1453 = vmatpush1.msra.mxu0 0.0
  %1454 = vmatprep.subr.mxu0 0.0
  %1455 = vmatpush1.msra.mxu0 0.0
  %1456 = vmatprep.subr.mxu0 0.0
  %1457 = vmatpush1.msra.mxu0 0.0
  %1458 = vmatprep.subr.mxu0 0.0
  %1459 = vmatpush1.msra.mxu0 0.0
  %1460 = vmatprep.subr.mxu0 0.0
  %1461 = vmatpush1.msra.mxu0 0.0
  %1462 = vmatprep.subr.mxu0 0.0
  %1463 = vmatpush1.msra.mxu0 0.0
  %1464 = vmatprep.subr.mxu0 0.0
  %1465 = vmatpush1.msra.mxu0 0.0
  %1466 = vmatprep.subr.mxu0 0.0
  %1467 = vmatpush1.msra.mxu0 0.0
  %1468 = vmatprep.subr.mxu0 0.0
  %1469 = vmatpush1.msra.mxu0 0.0
  %1470 = vmatprep.subr.mxu0 0.0
  %1471 = vmatpush1.msra.mxu0 0.0
  %1472 = vmatprep.subr.mxu0 0.0
  %1473 = vmatpush1.msra.mxu0 0.0
  %1474 = vmatprep.subr.mxu0 0.0
  %1475 = vmatpush1.msra.mxu0 0.0
  %1476 = vmatprep.mubr.f32.mxu0 0.0
  %1477 = vmatmul.mubr.f32.gmra.mrb[0].mxu0 %v487
  %v1478 = vpop.f32.mrb[0].mxu0
  %v1479 = vadd.f32 %v1409, %v1478
  %v1480 = vpop.f32.mrb[0].mxu0
  %1481 = vdwg.mxu0
  %v1482 = vadd.f32 %v1479, %v1141
  %v1483 = vxor.u32 %v1482, 2147483648
  %v1484 = vmul.f32 %v1483, 1.442695
  %v1485 = vpow.pop %v1484
  %v1486 = vadd.f32 %v1485, 1.0
  %v1487 = vrcp.pop %v1486
  %v1488 = vmul.f32 1.0, %v1487
  %v1489 = vtanh.pop %v1482
  %v1490 = vmul.f32 %v1488, %v1330
  %1492 = vrot.lane.b32.xlu0 %v1489, 64
  %v1493 = vpop.permute.xlu0 %1492
  %v1495 = vmul.f32 %v1488, %v1493
  %1497 = vrot.lane.b32.xlu0 %v1495, 32
  %v1498 = vpop.permute.xlu0 %1497
  %v1500 = vadd.f32 %v1490, %v1498
  %v1501 = vtanh.pop %v1500
  %1503 = vrot.lane.b32.xlu0 %v1501, 64
  %v1504 = vpop.permute.xlu0 %1503
  %v1506 = vmul.f32 %v1488, %v1504
  %1508 = vrot.lane.b32.xlu0 %v1506, 32
  %v1509 = vpop.permute.xlu0 %1508
  %v1510 = vsel %vm178, %v1509, 0
  %1512 = vmatprep.subr.mxu0 0.0
  %1513 = vmatpush1.msra.mxu0 %v989
  %1514 = vmatprep.subr.mxu0 0.0
  %1515 = vmatpush1.msra.mxu0 %v990
  %1516 = vmatprep.subr.mxu0 0.0
  %1517 = vmatpush1.msra.mxu0 %v991
  %1518 = vmatprep.subr.mxu0 0.0
  %1519 = vmatpush1.msra.mxu0 %v992
  %1520 = vmatprep.subr.mxu0 0.0
  %1521 = vmatpush1.msra.mxu0 0.0
  %1522 = vmatprep.subr.mxu0 0.0
  %1523 = vmatpush1.msra.mxu0 0.0
  %1524 = vmatprep.subr.mxu0 0.0
  %1525 = vmatpush1.msra.mxu0 0.0
  %1526 = vmatprep.subr.mxu0 0.0
  %1527 = vmatpush1.msra.mxu0 0.0
  %1528 = vmatprep.subr.mxu0 0.0
  %1529 = vmatpush1.msra.mxu0 0.0
  %1530 = vmatprep.subr.mxu0 0.0
  %1531 = vmatpush1.msra.mxu0 0.0
  %1532 = vmatprep.subr.mxu0 0.0
  %1533 = vmatpush1.msra.mxu0 0.0
  %1534 = vmatprep.subr.mxu0 0.0
  %1535 = vmatpush1.msra.mxu0 0.0
  %1536 = vmatprep.subr.mxu0 0.0
  %1537 = vmatpush1.msra.mxu0 0.0
  %1538 = vmatprep.subr.mxu0 0.0
  %1539 = vmatpush1.msra.mxu0 0.0
  %1540 = vmatprep.subr.mxu0 0.0
  %1541 = vmatpush1.msra.mxu0 0.0
  %1542 = vmatprep.subr.mxu0 0.0
  %1543 = vmatpush1.msra.mxu0 0.0
  %1544 = vmatprep.subr.mxu0 0.0
  %1545 = vmatpush1.msra.mxu0 0.0
  %1546 = vmatprep.subr.mxu0 0.0
  %1547 = vmatpush1.msra.mxu0 0.0
  %1548 = vmatprep.subr.mxu0 0.0
  %1549 = vmatpush1.msra.mxu0 0.0
  %1550 = vmatprep.subr.mxu0 0.0
  %1551 = vmatpush1.msra.mxu0 0.0
  %1552 = vmatprep.subr.mxu0 0.0
  %1553 = vmatpush1.msra.mxu0 0.0
  %1554 = vmatprep.subr.mxu0 0.0
  %1555 = vmatpush1.msra.mxu0 0.0
  %1556 = vmatprep.subr.mxu0 0.0
  %1557 = vmatpush1.msra.mxu0 0.0
  %1558 = vmatprep.subr.mxu0 0.0
  %1559 = vmatpush1.msra.mxu0 0.0
  %1560 = vmatprep.subr.mxu0 0.0
  %1561 = vmatpush1.msra.mxu0 0.0
  %1562 = vmatprep.subr.mxu0 0.0
  %1563 = vmatpush1.msra.mxu0 0.0
  %1564 = vmatprep.subr.mxu0 0.0
  %1565 = vmatpush1.msra.mxu0 0.0
  %1566 = vmatprep.subr.mxu0 0.0
  %1567 = vmatpush1.msra.mxu0 0.0
  %1568 = vmatprep.subr.mxu0 0.0
  %1569 = vmatpush1.msra.mxu0 0.0
  %1570 = vmatprep.subr.mxu0 0.0
  %1571 = vmatpush1.msra.mxu0 0.0
  %1572 = vmatprep.subr.mxu0 0.0
  %1573 = vmatpush1.msra.mxu0 0.0
  %1574 = vmatprep.subr.mxu0 0.0
  %1575 = vmatpush1.msra.mxu0 0.0
  %1576 = vmatprep.mubr.f32.mxu0 0.0
  %1577 = vmatmul.mubr.f32.gmra.mrb[0].mxu0 %v1510
  %v1578 = vpop.f32.mrb[0].mxu0
  %v1579 = vadd.f32 0.0, %v1578
  %v1580 = vpop.f32.mrb[0].mxu0
  %1581 = vdwg.mxu0
  %1582 = vmatprep.subr.mxu0 0.0
  %1583 = vmatpush1.msra.mxu0 %v994
  %1584 = vmatprep.subr.mxu0 0.0
  %1585 = vmatpush1.msra.mxu0 %v995
  %1586 = vmatprep.subr.mxu0 0.0
  %1587 = vmatpush1.msra.mxu0 %v996
  %1588 = vmatprep.subr.mxu0 0.0
  %1589 = vmatpush1.msra.mxu0 %v997
  %1590 = vmatprep.subr.mxu0 0.0
  %1591 = vmatpush1.msra.mxu0 0.0
  %1592 = vmatprep.subr.mxu0 0.0
  %1593 = vmatpush1.msra.mxu0 0.0
  %1594 = vmatprep.subr.mxu0 0.0
  %1595 = vmatpush1.msra.mxu0 0.0
  %1596 = vmatprep.subr.mxu0 0.0
  %1597 = vmatpush1.msra.mxu0 0.0
  %1598 = vmatprep.subr.mxu0 0.0
  %1599 = vmatpush1.msra.mxu0 0.0
  %1600 = vmatprep.subr.mxu0 0.0
  %1601 = vmatpush1.msra.mxu0 0.0
  %1602 = vmatprep.subr.mxu0 0.0
  %1603 = vmatpush1.msra.mxu0 0.0
  %1604 = vmatprep.subr.mxu0 0.0
  %1605 = vmatpush1.msra.mxu0 0.0
  %1606 = vmatprep.subr.mxu0 0.0
  %1607 = vmatpush1.msra.mxu0 0.0
  %1608 = vmatprep.subr.mxu0 0.0
  %1609 = vmatpush1.msra.mxu0 0.0
  %1610 = vmatprep.subr.mxu0 0.0
  %1611 = vmatpush1.msra.mxu0 0.0
  %1612 = vmatprep.subr.mxu0 0.0
  %1613 = vmatpush1.msra.mxu0 0.0
  %1614 = vmatprep.subr.mxu0 0.0
  %1615 = vmatpush1.msra.mxu0 0.0
  %1616 = vmatprep.subr.mxu0 0.0
  %1617 = vmatpush1.msra.mxu0 0.0
  %1618 = vmatprep.subr.mxu0 0.0
  %1619 = vmatpush1.msra.mxu0 0.0
  %1620 = vmatprep.subr.mxu0 0.0
  %1621 = vmatpush1.msra.mxu0 0.0
  %1622 = vmatprep.subr.mxu0 0.0
  %1623 = vmatpush1.msra.mxu0 0.0
  %1624 = vmatprep.subr.mxu0 0.0
  %1625 = vmatpush1.msra.mxu0 0.0
  %1626 = vmatprep.subr.mxu0 0.0
  %1627 = vmatpush1.msra.mxu0 0.0
  %1628 = vmatprep.subr.mxu0 0.0
  %1629 = vmatpush1.msra.mxu0 0.0
  %1630 = vmatprep.subr.mxu0 0.0
  %1631 = vmatpush1.msra.mxu0 0.0
  %1632 = vmatprep.subr.mxu0 0.0
  %1633 = vmatpush1.msra.mxu0 0.0
  %1634 = vmatprep.subr.mxu0 0.0
  %1635 = vmatpush1.msra.mxu0 0.0
  %1636 = vmatprep.subr.mxu0 0.0
  %1637 = vmatpush1.msra.mxu0 0.0
  %1638 = vmatprep.subr.mxu0 0.0
  %1639 = vmatpush1.msra.mxu0 0.0
  %1640 = vmatprep.subr.mxu0 0.0
  %1641 = vmatpush1.msra.mxu0 0.0
  %1642 = vmatprep.subr.mxu0 0.0
  %1643 = vmatpush1.msra.mxu0 0.0
  %1644 = vmatprep.subr.mxu0 0.0
  %1645 = vmatpush1.msra.mxu0 0.0
  %1646 = vmatprep.mubr.f32.mxu0 0.0
  %1647 = vmatmul.mubr.f32.gmra.mrb[0].mxu0 %v588
  %v1648 = vpop.f32.mrb[0].mxu0
  %v1649 = vadd.f32 %v1579, %v1648
  %v1650 = vpop.f32.mrb[0].mxu0
  %1651 = vdwg.mxu0
  %v1652 = vadd.f32 %v1649, %v1141
  %v1653 = vxor.u32 %v1652, 2147483648
  %v1654 = vmul.f32 %v1653, 1.442695
  %v1655 = vpow.pop %v1654
  %v1656 = vadd.f32 %v1655, 1.0
  %v1657 = vrcp.pop %v1656
  %v1658 = vmul.f32 1.0, %v1657
  %v1659 = vtanh.pop %v1652
  %v1660 = vmul.f32 %v1658, %v1500
  %1662 = vrot.lane.b32.xlu0 %v1659, 64
  %v1663 = vpop.permute.xlu0 %1662
  %v1665 = vmul.f32 %v1658, %v1663
  %1667 = vrot.lane.b32.xlu0 %v1665, 32
  %v1668 = vpop.permute.xlu0 %1667
  %v1670 = vadd.f32 %v1660, %v1668
  %v1671 = vtanh.pop %v1670
  %1673 = vrot.lane.b32.xlu0 %v1671, 64
  %v1674 = vpop.permute.xlu0 %1673
  %v1676 = vmul.f32 %v1658, %v1674
  %1678 = vrot.lane.b32.xlu0 %v1676, 32
  %v1679 = vpop.permute.xlu0 %1678
  %v1680 = vsel %vm178, %v1679, 0
  %1682 = vmatprep.subr.mxu0 0.0
  %1683 = vmatpush1.msra.mxu0 %v989
  %1684 = vmatprep.subr.mxu0 0.0
  %1685 = vmatpush1.msra.mxu0 %v990
  %1686 = vmatprep.subr.mxu0 0.0
  %1687 = vmatpush1.msra.mxu0 %v991
  %1688 = vmatprep.subr.mxu0 0.0
  %1689 = vmatpush1.msra.mxu0 %v992
  %1690 = vmatprep.subr.mxu0 0.0
  %1691 = vmatpush1.msra.mxu0 0.0
  %1692 = vmatprep.subr.mxu0 0.0
  %1693 = vmatpush1.msra.mxu0 0.0
  %1694 = vmatprep.subr.mxu0 0.0
  %1695 = vmatpush1.msra.mxu0 0.0
  %1696 = vmatprep.subr.mxu0 0.0
  %1697 = vmatpush1.msra.mxu0 0.0
  %1698 = vmatprep.subr.mxu0 0.0
  %1699 = vmatpush1.msra.mxu0 0.0
  %1700 = vmatprep.subr.mxu0 0.0
  %1701 = vmatpush1.msra.mxu0 0.0
  %1702 = vmatprep.subr.mxu0 0.0
  %1703 = vmatpush1.msra.mxu0 0.0
  %1704 = vmatprep.subr.mxu0 0.0
  %1705 = vmatpush1.msra.mxu0 0.0
  %1706 = vmatprep.subr.mxu0 0.0
  %1707 = vmatpush1.msra.mxu0 0.0
  %1708 = vmatprep.subr.mxu0 0.0
  %1709 = vmatpush1.msra.mxu0 0.0
  %1710 = vmatprep.subr.mxu0 0.0
  %1711 = vmatpush1.msra.mxu0 0.0
  %1712 = vmatprep.subr.mxu0 0.0
  %1713 = vmatpush1.msra.mxu0 0.0
  %1714 = vmatprep.subr.mxu0 0.0
  %1715 = vmatpush1.msra.mxu0 0.0
  %1716 = vmatprep.subr.mxu0 0.0
  %1717 = vmatpush1.msra.mxu0 0.0
  %1718 = vmatprep.subr.mxu0 0.0
  %1719 = vmatpush1.msra.mxu0 0.0
  %1720 = vmatprep.subr.mxu0 0.0
  %1721 = vmatpush1.msra.mxu0 0.0
  %1722 = vmatprep.subr.mxu0 0.0
  %1723 = vmatpush1.msra.mxu0 0.0
  %1724 = vmatprep.subr.mxu0 0.0
  %1725 = vmatpush1.msra.mxu0 0.0
  %1726 = vmatprep.subr.mxu0 0.0
  %1727 = vmatpush1.msra.mxu0 0.0
  %1728 = vmatprep.subr.mxu0 0.0
  %1729 = vmatpush1.msra.mxu0 0.0
  %1730 = vmatprep.subr.mxu0 0.0
  %1731 = vmatpush1.msra.mxu0 0.0
  %1732 = vmatprep.subr.mxu0 0.0
  %1733 = vmatpush1.msra.mxu0 0.0
  %1734 = vmatprep.subr.mxu0 0.0
  %1735 = vmatpush1.msra.mxu0 0.0
  %1736 = vmatprep.subr.mxu0 0.0
  %1737 = vmatpush1.msra.mxu0 0.0
  %1738 = vmatprep.subr.mxu0 0.0
  %1739 = vmatpush1.msra.mxu0 0.0
  %1740 = vmatprep.subr.mxu0 0.0
  %1741 = vmatpush1.msra.mxu0 0.0
  %1742 = vmatprep.subr.mxu0 0.0
  %1743 = vmatpush1.msra.mxu0 0.0
  %1744 = vmatprep.subr.mxu0 0.0
  %1745 = vmatpush1.msra.mxu0 0.0
  %1746 = vmatprep.mubr.f32.mxu0 0.0
  %1747 = vmatmul.mubr.f32.gmra.mrb[0].mxu0 %v1680
  %v1748 = vpop.f32.mrb[0].mxu0
  %v1749 = vadd.f32 0.0, %v1748
  %v1750 = vpop.f32.mrb[0].mxu0
  %1751 = vdwg.mxu0
  %1752 = vmatprep.subr.mxu0 0.0
  %1753 = vmatpush1.msra.mxu0 %v994
  %1754 = vmatprep.subr.mxu0 0.0
  %1755 = vmatpush1.msra.mxu0 %v995
  %1756 = vmatprep.subr.mxu0 0.0
  %1757 = vmatpush1.msra.mxu0 %v996
  %1758 = vmatprep.subr.mxu0 0.0
  %1759 = vmatpush1.msra.mxu0 %v997
  %1760 = vmatprep.subr.mxu0 0.0
  %1761 = vmatpush1.msra.mxu0 0.0
  %1762 = vmatprep.subr.mxu0 0.0
  %1763 = vmatpush1.msra.mxu0 0.0
  %1764 = vmatprep.subr.mxu0 0.0
  %1765 = vmatpush1.msra.mxu0 0.0
  %1766 = vmatprep.subr.mxu0 0.0
  %1767 = vmatpush1.msra.mxu0 0.0
  %1768 = vmatprep.subr.mxu0 0.0
  %1769 = vmatpush1.msra.mxu0 0.0
  %1770 = vmatprep.subr.mxu0 0.0
  %1771 = vmatpush1.msra.mxu0 0.0
  %1772 = vmatprep.subr.mxu0 0.0
  %1773 = vmatpush1.msra.mxu0 0.0
  %1774 = vmatprep.subr.mxu0 0.0
  %1775 = vmatpush1.msra.mxu0 0.0
  %1776 = vmatprep.subr.mxu0 0.0
  %1777 = vmatpush1.msra.mxu0 0.0
  %1778 = vmatprep.subr.mxu0 0.0
  %1779 = vmatpush1.msra.mxu0 0.0
  %1780 = vmatprep.subr.mxu0 0.0
  %1781 = vmatpush1.msra.mxu0 0.0
  %1782 = vmatprep.subr.mxu0 0.0
  %1783 = vmatpush1.msra.mxu0 0.0
  %1784 = vmatprep.subr.mxu0 0.0
  %1785 = vmatpush1.msra.mxu0 0.0
  %1786 = vmatprep.subr.mxu0 0.0
  %1787 = vmatpush1.msra.mxu0 0.0
  %1788 = vmatprep.subr.mxu0 0.0
  %1789 = vmatpush1.msra.mxu0 0.0
  %1790 = vmatprep.subr.mxu0 0.0
  %1791 = vmatpush1.msra.mxu0 0.0
  %1792 = vmatprep.subr.mxu0 0.0
  %1793 = vmatpush1.msra.mxu0 0.0
  %1794 = vmatprep.subr.mxu0 0.0
  %1795 = vmatpush1.msra.mxu0 0.0
  %1796 = vmatprep.subr.mxu0 0.0
  %1797 = vmatpush1.msra.mxu0 0.0
  %1798 = vmatprep.subr.mxu0 0.0
  %1799 = vmatpush1.msra.mxu0 0.0
  %1800 = vmatprep.subr.mxu0 0.0
  %1801 = vmatpush1.msra.mxu0 0.0
  %1802 = vmatprep.subr.mxu0 0.0
  %1803 = vmatpush1.msra.mxu0 0.0
  %1804 = vmatprep.subr.mxu0 0.0
  %1805 = vmatpush1.msra.mxu0 0.0
  %1806 = vmatprep.subr.mxu0 0.0
  %1807 = vmatpush1.msra.mxu0 0.0
  %1808 = vmatprep.subr.mxu0 0.0
  %1809 = vmatpush1.msra.mxu0 0.0
  %1810 = vmatprep.subr.mxu0 0.0
  %1811 = vmatpush1.msra.mxu0 0.0
  %1812 = vmatprep.subr.mxu0 0.0
  %1813 = vmatpush1.msra.mxu0 0.0
  %1814 = vmatprep.subr.mxu0 0.0
  %1815 = vmatpush1.msra.mxu0 0.0
  %1816 = vmatprep.mubr.f32.mxu0 0.0
  %1817 = vmatmul.mubr.f32.gmra.mrb[0].mxu0 %v689
  %v1818 = vpop.f32.mrb[0].mxu0
  %v1819 = vadd.f32 %v1749, %v1818
  %v1820 = vpop.f32.mrb[0].mxu0
  %1821 = vdwg.mxu0
  %v1822 = vadd.f32 %v1819, %v1141
  %v1823 = vxor.u32 %v1822, 2147483648
  %v1824 = vmul.f32 %v1823, 1.442695
  %v1825 = vpow.pop %v1824
  %v1826 = vadd.f32 %v1825, 1.0
  %v1827 = vrcp.pop %v1826
  %v1828 = vmul.f32 1.0, %v1827
  %v1829 = vtanh.pop %v1822
  %v1830 = vmul.f32 %v1828, %v1670
  %1832 = vrot.lane.b32.xlu0 %v1829, 64
  %v1833 = vpop.permute.xlu0 %1832
  %v1835 = vmul.f32 %v1828, %v1833
  %1837 = vrot.lane.b32.xlu0 %v1835, 32
  %v1838 = vpop.permute.xlu0 %1837
  %v1840 = vadd.f32 %v1830, %v1838
  %v1841 = vtanh.pop %v1840
  %1843 = vrot.lane.b32.xlu0 %v1841, 64
  %v1844 = vpop.permute.xlu0 %1843
  %v1846 = vmul.f32 %v1828, %v1844
  %1848 = vrot.lane.b32.xlu0 %v1846, 32
  %v1849 = vpop.permute.xlu0 %1848
  %v1850 = vsel %vm178, %v1849, 0
  %1852 = vmatprep.subr.mxu0 0.0
  %1853 = vmatpush1.msra.mxu0 %v989
  %1854 = vmatprep.subr.mxu0 0.0
  %1855 = vmatpush1.msra.mxu0 %v990
  %1856 = vmatprep.subr.mxu0 0.0
  %1857 = vmatpush1.msra.mxu0 %v991
  %1858 = vmatprep.subr.mxu0 0.0
  %1859 = vmatpush1.msra.mxu0 %v992
  %1860 = vmatprep.subr.mxu0 0.0
  %1861 = vmatpush1.msra.mxu0 0.0
  %1862 = vmatprep.subr.mxu0 0.0
  %1863 = vmatpush1.msra.mxu0 0.0
  %1864 = vmatprep.subr.mxu0 0.0
  %1865 = vmatpush1.msra.mxu0 0.0
  %1866 = vmatprep.subr.mxu0 0.0
  %1867 = vmatpush1.msra.mxu0 0.0
  %1868 = vmatprep.subr.mxu0 0.0
  %1869 = vmatpush1.msra.mxu0 0.0
  %1870 = vmatprep.subr.mxu0 0.0
  %1871 = vmatpush1.msra.mxu0 0.0
  %1872 = vmatprep.subr.mxu0 0.0
  %1873 = vmatpush1.msra.mxu0 0.0
  %1874 = vmatprep.subr.mxu0 0.0
  %1875 = vmatpush1.msra.mxu0 0.0
  %1876 = vmatprep.subr.mxu0 0.0
  %1877 = vmatpush1.msra.mxu0 0.0
  %1878 = vmatprep.subr.mxu0 0.0
  %1879 = vmatpush1.msra.mxu0 0.0
  %1880 = vmatprep.subr.mxu0 0.0
  %1881 = vmatpush1.msra.mxu0 0.0
  %1882 = vmatprep.subr.mxu0 0.0
  %1883 = vmatpush1.msra.mxu0 0.0
  %1884 = vmatprep.subr.mxu0 0.0
  %1885 = vmatpush1.msra.mxu0 0.0
  %1886 = vmatprep.subr.mxu0 0.0
  %1887 = vmatpush1.msra.mxu0 0.0
  %1888 = vmatprep.subr.mxu0 0.0
  %1889 = vmatpush1.msra.mxu0 0.0
  %1890 = vmatprep.subr.mxu0 0.0
  %1891 = vmatpush1.msra.mxu0 0.0
  %1892 = vmatprep.subr.mxu0 0.0
  %1893 = vmatpush1.msra.mxu0 0.0
  %1894 = vmatprep.subr.mxu0 0.0
  %1895 = vmatpush1.msra.mxu0 0.0
  %1896 = vmatprep.subr.mxu0 0.0
  %1897 = vmatpush1.msra.mxu0 0.0
  %1898 = vmatprep.subr.mxu0 0.0
  %1899 = vmatpush1.msra.mxu0 0.0
  %1900 = vmatprep.subr.mxu0 0.0
  %1901 = vmatpush1.msra.mxu0 0.0
  %1902 = vmatprep.subr.mxu0 0.0
  %1903 = vmatpush1.msra.mxu0 0.0
  %1904 = vmatprep.subr.mxu0 0.0
  %1905 = vmatpush1.msra.mxu0 0.0
  %1906 = vmatprep.subr.mxu0 0.0
  %1907 = vmatpush1.msra.mxu0 0.0
  %1908 = vmatprep.subr.mxu0 0.0
  %1909 = vmatpush1.msra.mxu0 0.0
  %1910 = vmatprep.subr.mxu0 0.0
  %1911 = vmatpush1.msra.mxu0 0.0
  %1912 = vmatprep.subr.mxu0 0.0
  %1913 = vmatpush1.msra.mxu0 0.0
  %1914 = vmatprep.subr.mxu0 0.0
  %1915 = vmatpush1.msra.mxu0 0.0
  %1916 = vmatprep.mubr.f32.mxu0 0.0
  %1917 = vmatmul.mubr.f32.gmra.mrb[0].mxu0 %v1850
  %v1918 = vpop.f32.mrb[0].mxu0
  %v1919 = vadd.f32 0.0, %v1918
  %v1920 = vpop.f32.mrb[0].mxu0
  %1921 = vdwg.mxu0
  %1922 = vmatprep.subr.mxu0 0.0
  %1923 = vmatpush1.msra.mxu0 %v994
  %1924 = vmatprep.subr.mxu0 0.0
  %1925 = vmatpush1.msra.mxu0 %v995
  %1926 = vmatprep.subr.mxu0 0.0
  %1927 = vmatpush1.msra.mxu0 %v996
  %1928 = vmatprep.subr.mxu0 0.0
  %1929 = vmatpush1.msra.mxu0 %v997
  %1930 = vmatprep.subr.mxu0 0.0
  %1931 = vmatpush1.msra.mxu0 0.0
  %1932 = vmatprep.subr.mxu0 0.0
  %1933 = vmatpush1.msra.mxu0 0.0
  %1934 = vmatprep.subr.mxu0 0.0
  %1935 = vmatpush1.msra.mxu0 0.0
  %1936 = vmatprep.subr.mxu0 0.0
  %1937 = vmatpush1.msra.mxu0 0.0
  %1938 = vmatprep.subr.mxu0 0.0
  %1939 = vmatpush1.msra.mxu0 0.0
  %1940 = vmatprep.subr.mxu0 0.0
  %1941 = vmatpush1.msra.mxu0 0.0
  %1942 = vmatprep.subr.mxu0 0.0
  %1943 = vmatpush1.msra.mxu0 0.0
  %1944 = vmatprep.subr.mxu0 0.0
  %1945 = vmatpush1.msra.mxu0 0.0
  %1946 = vmatprep.subr.mxu0 0.0
  %1947 = vmatpush1.msra.mxu0 0.0
  %1948 = vmatprep.subr.mxu0 0.0
  %1949 = vmatpush1.msra.mxu0 0.0
  %1950 = vmatprep.subr.mxu0 0.0
  %1951 = vmatpush1.msra.mxu0 0.0
  %1952 = vmatprep.subr.mxu0 0.0
  %1953 = vmatpush1.msra.mxu0 0.0
  %1954 = vmatprep.subr.mxu0 0.0
  %1955 = vmatpush1.msra.mxu0 0.0
  %1956 = vmatprep.subr.mxu0 0.0
  %1957 = vmatpush1.msra.mxu0 0.0
  %1958 = vmatprep.subr.mxu0 0.0
  %1959 = vmatpush1.msra.mxu0 0.0
  %1960 = vmatprep.subr.mxu0 0.0
  %1961 = vmatpush1.msra.mxu0 0.0
  %1962 = vmatprep.subr.mxu0 0.0
  %1963 = vmatpush1.msra.mxu0 0.0
  %1964 = vmatprep.subr.mxu0 0.0
  %1965 = vmatpush1.msra.mxu0 0.0
  %1966 = vmatprep.subr.mxu0 0.0
  %1967 = vmatpush1.msra.mxu0 0.0
  %1968 = vmatprep.subr.mxu0 0.0
  %1969 = vmatpush1.msra.mxu0 0.0
  %1970 = vmatprep.subr.mxu0 0.0
  %1971 = vmatpush1.msra.mxu0 0.0
  %1972 = vmatprep.subr.mxu0 0.0
  %1973 = vmatpush1.msra.mxu0 0.0
  %1974 = vmatprep.subr.mxu0 0.0
  %1975 = vmatpush1.msra.mxu0 0.0
  %1976 = vmatprep.subr.mxu0 0.0
  %1977 = vmatpush1.msra.mxu0 0.0
  %1978 = vmatprep.subr.mxu0 0.0
  %1979 = vmatpush1.msra.mxu0 0.0
  %1980 = vmatprep.subr.mxu0 0.0
  %1981 = vmatpush1.msra.mxu0 0.0
  %1982 = vmatprep.subr.mxu0 0.0
  %1983 = vmatpush1.msra.mxu0 0.0
  %1984 = vmatprep.subr.mxu0 0.0
  %1985 = vmatpush1.msra.mxu0 0.0
  %1986 = vmatprep.mubr.f32.mxu0 0.0
  %1987 = vmatmul.mubr.f32.gmra.mrb[0].mxu0 %v790
  %v1988 = vpop.f32.mrb[0].mxu0
  %v1989 = vadd.f32 %v1919, %v1988
  %v1990 = vpop.f32.mrb[0].mxu0
  %1991 = vdwg.mxu0
  %v1992 = vadd.f32 %v1989, %v1141
  %v1993 = vxor.u32 %v1992, 2147483648
  %v1994 = vmul.f32 %v1993, 1.442695
  %v1995 = vpow.pop %v1994
  %v1996 = vadd.f32 %v1995, 1.0
  %v1997 = vrcp.pop %v1996
  %v1998 = vmul.f32 1.0, %v1997
  %v1999 = vtanh.pop %v1992
  %v2000 = vmul.f32 %v1998, %v1840
  %2002 = vrot.lane.b32.xlu0 %v1999, 64
  %v2003 = vpop.permute.xlu0 %2002
  %v2005 = vmul.f32 %v1998, %v2003
  %2007 = vrot.lane.b32.xlu0 %v2005, 32
  %v2008 = vpop.permute.xlu0 %2007
  %v2010 = vadd.f32 %v2000, %v2008
  %v2011 = vtanh.pop %v2010
  %2013 = vrot.lane.b32.xlu0 %v2011, 64
  %v2014 = vpop.permute.xlu0 %2013
  %v2016 = vmul.f32 %v1998, %v2014
  %2018 = vrot.lane.b32.xlu0 %v2016, 32
  %v2019 = vpop.permute.xlu0 %2018
  %v2020 = vsel %vm178, %v2019, 0
  %2022 = vmatprep.subr.mxu0 0.0
  %2023 = vmatpush1.msra.mxu0 %v989
  %2024 = vmatprep.subr.mxu0 0.0
  %2025 = vmatpush1.msra.mxu0 %v990
  %2026 = vmatprep.subr.mxu0 0.0
  %2027 = vmatpush1.msra.mxu0 %v991
  %2028 = vmatprep.subr.mxu0 0.0
  %2029 = vmatpush1.msra.mxu0 %v992
  %2030 = vmatprep.subr.mxu0 0.0
  %2031 = vmatpush1.msra.mxu0 0.0
  %2032 = vmatprep.subr.mxu0 0.0
  %2033 = vmatpush1.msra.mxu0 0.0
  %2034 = vmatprep.subr.mxu0 0.0
  %2035 = vmatpush1.msra.mxu0 0.0
  %2036 = vmatprep.subr.mxu0 0.0
  %2037 = vmatpush1.msra.mxu0 0.0
  %2038 = vmatprep.subr.mxu0 0.0
  %2039 = vmatpush1.msra.mxu0 0.0
  %2040 = vmatprep.subr.mxu0 0.0
  %2041 = vmatpush1.msra.mxu0 0.0
  %2042 = vmatprep.subr.mxu0 0.0
  %2043 = vmatpush1.msra.mxu0 0.0
  %2044 = vmatprep.subr.mxu0 0.0
  %2045 = vmatpush1.msra.mxu0 0.0
  %2046 = vmatprep.subr.mxu0 0.0
  %2047 = vmatpush1.msra.mxu0 0.0
  %2048 = vmatprep.subr.mxu0 0.0
  %2049 = vmatpush1.msra.mxu0 0.0
  %2050 = vmatprep.subr.mxu0 0.0
  %2051 = vmatpush1.msra.mxu0 0.0
  %2052 = vmatprep.subr.mxu0 0.0
  %2053 = vmatpush1.msra.mxu0 0.0
  %2054 = vmatprep.subr.mxu0 0.0
  %2055 = vmatpush1.msra.mxu0 0.0
  %2056 = vmatprep.subr.mxu0 0.0
  %2057 = vmatpush1.msra.mxu0 0.0
  %2058 = vmatprep.subr.mxu0 0.0
  %2059 = vmatpush1.msra.mxu0 0.0
  %2060 = vmatprep.subr.mxu0 0.0
  %2061 = vmatpush1.msra.mxu0 0.0
  %2062 = vmatprep.subr.mxu0 0.0
  %2063 = vmatpush1.msra.mxu0 0.0
  %2064 = vmatprep.subr.mxu0 0.0
  %2065 = vmatpush1.msra.mxu0 0.0
  %2066 = vmatprep.subr.mxu0 0.0
  %2067 = vmatpush1.msra.mxu0 0.0
  %2068 = vmatprep.subr.mxu0 0.0
  %2069 = vmatpush1.msra.mxu0 0.0
  %2070 = vmatprep.subr.mxu0 0.0
  %2071 = vmatpush1.msra.mxu0 0.0
  %2072 = vmatprep.subr.mxu0 0.0
  %2073 = vmatpush1.msra.mxu0 0.0
  %2074 = vmatprep.subr.mxu0 0.0
  %2075 = vmatpush1.msra.mxu0 0.0
  %2076 = vmatprep.subr.mxu0 0.0
  %2077 = vmatpush1.msra.mxu0 0.0
  %2078 = vmatprep.subr.mxu0 0.0
  %2079 = vmatpush1.msra.mxu0 0.0
  %2080 = vmatprep.subr.mxu0 0.0
  %2081 = vmatpush1.msra.mxu0 0.0
  %2082 = vmatprep.subr.mxu0 0.0
  %2083 = vmatpush1.msra.mxu0 0.0
  %2084 = vmatprep.subr.mxu0 0.0
  %2085 = vmatpush1.msra.mxu0 0.0
  %2086 = vmatprep.mubr.f32.mxu0 0.0
  %2087 = vmatmul.mubr.f32.gmra.mrb[0].mxu0 %v2020
  %v2088 = vpop.f32.mrb[0].mxu0
  %v2089 = vadd.f32 0.0, %v2088
  %v2090 = vpop.f32.mrb[0].mxu0
  %2091 = vdwg.mxu0
  %2092 = vmatprep.subr.mxu0 0.0
  %2093 = vmatpush1.msra.mxu0 %v994
  %2094 = vmatprep.subr.mxu0 0.0
  %2095 = vmatpush1.msra.mxu0 %v995
  %2096 = vmatprep.subr.mxu0 0.0
  %2097 = vmatpush1.msra.mxu0 %v996
  %2098 = vmatprep.subr.mxu0 0.0
  %2099 = vmatpush1.msra.mxu0 %v997
  %2100 = vmatprep.subr.mxu0 0.0
  %2101 = vmatpush1.msra.mxu0 0.0
  %2102 = vmatprep.subr.mxu0 0.0
  %2103 = vmatpush1.msra.mxu0 0.0
  %2104 = vmatprep.subr.mxu0 0.0
  %2105 = vmatpush1.msra.mxu0 0.0
  %2106 = vmatprep.subr.mxu0 0.0
  %2107 = vmatpush1.msra.mxu0 0.0
  %2108 = vmatprep.subr.mxu0 0.0
  %2109 = vmatpush1.msra.mxu0 0.0
  %2110 = vmatprep.subr.mxu0 0.0
  %2111 = vmatpush1.msra.mxu0 0.0
  %2112 = vmatprep.subr.mxu0 0.0
  %2113 = vmatpush1.msra.mxu0 0.0
  %2114 = vmatprep.subr.mxu0 0.0
  %2115 = vmatpush1.msra.mxu0 0.0
  %2116 = vmatprep.subr.mxu0 0.0
  %2117 = vmatpush1.msra.mxu0 0.0
  %2118 = vmatprep.subr.mxu0 0.0
  %2119 = vmatpush1.msra.mxu0 0.0
  %2120 = vmatprep.subr.mxu0 0.0
  %2121 = vmatpush1.msra.mxu0 0.0
  %2122 = vmatprep.subr.mxu0 0.0
  %2123 = vmatpush1.msra.mxu0 0.0
  %2124 = vmatprep.subr.mxu0 0.0
  %2125 = vmatpush1.msra.mxu0 0.0
  %2126 = vmatprep.subr.mxu0 0.0
  %2127 = vmatpush1.msra.mxu0 0.0
  %2128 = vmatprep.subr.mxu0 0.0
  %2129 = vmatpush1.msra.mxu0 0.0
  %2130 = vmatprep.subr.mxu0 0.0
  %2131 = vmatpush1.msra.mxu0 0.0
  %2132 = vmatprep.subr.mxu0 0.0
  %2133 = vmatpush1.msra.mxu0 0.0
  %2134 = vmatprep.subr.mxu0 0.0
  %2135 = vmatpush1.msra.mxu0 0.0
  %2136 = vmatprep.subr.mxu0 0.0
  %2137 = vmatpush1.msra.mxu0 0.0
  %2138 = vmatprep.subr.mxu0 0.0
  %2139 = vmatpush1.msra.mxu0 0.0
  %2140 = vmatprep.subr.mxu0 0.0
  %2141 = vmatpush1.msra.mxu0 0.0
  %2142 = vmatprep.subr.mxu0 0.0
  %2143 = vmatpush1.msra.mxu0 0.0
  %2144 = vmatprep.subr.mxu0 0.0
  %2145 = vmatpush1.msra.mxu0 0.0
  %2146 = vmatprep.subr.mxu0 0.0
  %2147 = vmatpush1.msra.mxu0 0.0
  %2148 = vmatprep.subr.mxu0 0.0
  %2149 = vmatpush1.msra.mxu0 0.0
  %2150 = vmatprep.subr.mxu0 0.0
  %2151 = vmatpush1.msra.mxu0 0.0
  %2152 = vmatprep.subr.mxu0 0.0
  %2153 = vmatpush1.msra.mxu0 0.0
  %2154 = vmatprep.subr.mxu0 0.0
  %2155 = vmatpush1.msra.mxu0 0.0
  %2156 = vmatprep.mubr.f32.mxu0 0.0
  %2157 = vmatmul.mubr.f32.gmra.mrb[0].mxu0 %v891
  %v2158 = vpop.f32.mrb[0].mxu0
  %v2159 = vadd.f32 %v2089, %v2158
  %v2160 = vpop.f32.mrb[0].mxu0
  %2161 = vdwg.mxu0
  %v2162 = vadd.f32 %v2159, %v1141
  %v2163 = vxor.u32 %v2162, 2147483648
  %v2164 = vmul.f32 %v2163, 1.442695
  %v2165 = vpow.pop %v2164
  %v2166 = vadd.f32 %v2165, 1.0
  %v2167 = vrcp.pop %v2166
  %v2168 = vmul.f32 1.0, %v2167
  %v2169 = vtanh.pop %v2162
  %v2170 = vmul.f32 %v2168, %v2010
  %2172 = vrot.lane.b32.xlu0 %v2169, 64
  %v2173 = vpop.permute.xlu0 %2172
  %v2175 = vmul.f32 %v2168, %v2173
  %2177 = vrot.lane.b32.xlu0 %v2175, 32
  %v2178 = vpop.permute.xlu0 %2177
  %v2180 = vadd.f32 %v2170, %v2178
  %v2181 = vtanh.pop %v2180
  %2183 = vrot.lane.b32.xlu0 %v2181, 64
  %v2184 = vpop.permute.xlu0 %2183
  %v2186 = vmul.f32 %v2168, %v2184
  %2188 = vrot.lane.b32.xlu0 %v2186, 32
  %v2189 = vpop.permute.xlu0 %2188
  %v2190 = vsel %vm178, %v2189, 0
  %2192 = vmatprep.subr.mxu0 0.0
  %2193 = vmatpush1.msra.mxu0 %v989
  %2194 = vmatprep.subr.mxu0 0.0
  %2195 = vmatpush1.msra.mxu0 %v990
  %2196 = vmatprep.subr.mxu0 0.0
  %2197 = vmatpush1.msra.mxu0 %v991
  %2198 = vmatprep.subr.mxu0 0.0
  %2199 = vmatpush1.msra.mxu0 %v992
  %2200 = vmatprep.subr.mxu0 0.0
  %2201 = vmatpush1.msra.mxu0 0.0
  %2202 = vmatprep.subr.mxu0 0.0
  %2203 = vmatpush1.msra.mxu0 0.0
  %2204 = vmatprep.subr.mxu0 0.0
  %2205 = vmatpush1.msra.mxu0 0.0
  %2206 = vmatprep.subr.mxu0 0.0
  %2207 = vmatpush1.msra.mxu0 0.0
  %2208 = vmatprep.subr.mxu0 0.0
  %2209 = vmatpush1.msra.mxu0 0.0
  %2210 = vmatprep.subr.mxu0 0.0
  %2211 = vmatpush1.msra.mxu0 0.0
  %2212 = vmatprep.subr.mxu0 0.0
  %2213 = vmatpush1.msra.mxu0 0.0
  %2214 = vmatprep.subr.mxu0 0.0
  %2215 = vmatpush1.msra.mxu0 0.0
  %2216 = vmatprep.subr.mxu0 0.0
  %2217 = vmatpush1.msra.mxu0 0.0
  %2218 = vmatprep.subr.mxu0 0.0
  %2219 = vmatpush1.msra.mxu0 0.0
  %2220 = vmatprep.subr.mxu0 0.0
  %2221 = vmatpush1.msra.mxu0 0.0
  %2222 = vmatprep.subr.mxu0 0.0
  %2223 = vmatpush1.msra.mxu0 0.0
  %2224 = vmatprep.subr.mxu0 0.0
  %2225 = vmatpush1.msra.mxu0 0.0
  %2226 = vmatprep.subr.mxu0 0.0
  %2227 = vmatpush1.msra.mxu0 0.0
  %2228 = vmatprep.subr.mxu0 0.0
  %2229 = vmatpush1.msra.mxu0 0.0
  %2230 = vmatprep.subr.mxu0 0.0
  %2231 = vmatpush1.msra.mxu0 0.0
  %2232 = vmatprep.subr.mxu0 0.0
  %2233 = vmatpush1.msra.mxu0 0.0
  %2234 = vmatprep.subr.mxu0 0.0
  %2235 = vmatpush1.msra.mxu0 0.0
  %2236 = vmatprep.subr.mxu0 0.0
  %2237 = vmatpush1.msra.mxu0 0.0
  %2238 = vmatprep.subr.mxu0 0.0
  %2239 = vmatpush1.msra.mxu0 0.0
  %2240 = vmatprep.subr.mxu0 0.0
  %2241 = vmatpush1.msra.mxu0 0.0
  %2242 = vmatprep.subr.mxu0 0.0
  %2243 = vmatpush1.msra.mxu0 0.0
  %2244 = vmatprep.subr.mxu0 0.0
  %2245 = vmatpush1.msra.mxu0 0.0
  %2246 = vmatprep.subr.mxu0 0.0
  %2247 = vmatpush1.msra.mxu0 0.0
  %2248 = vmatprep.subr.mxu0 0.0
  %2249 = vmatpush1.msra.mxu0 0.0
  %2250 = vmatprep.subr.mxu0 0.0
  %2251 = vmatpush1.msra.mxu0 0.0
  %2252 = vmatprep.subr.mxu0 0.0
  %2253 = vmatpush1.msra.mxu0 0.0
  %2254 = vmatprep.subr.mxu0 0.0
  %2255 = vmatpush1.msra.mxu0 0.0
  %2256 = vmatprep.mubr.f32.mxu0 0.0
  %2257 = vmatmul.mubr.f32.gmra.mrb[0].mxu0 %v2190
  %v2258 = vpop.f32.mrb[0].mxu0
  %v2259 = vadd.f32 0.0, %v2258
  %v2260 = vpop.f32.mrb[0].mxu0
  %2261 = vdwg.mxu0
  %2263 = vrot.lane.b32.xlu0 %v988, 32
  %v2264 = vpop.permute.xlu0 %2263
  %v2265 = vsel %vm178, %v2264, 0
  %2267 = vmatprep.subr.mxu0 0.0
  %2268 = vmatpush1.msra.mxu0 %v994
  %2269 = vmatprep.subr.mxu0 0.0
  %2270 = vmatpush1.msra.mxu0 %v995
  %2271 = vmatprep.subr.mxu0 0.0
  %2272 = vmatpush1.msra.mxu0 %v996
  %2273 = vmatprep.subr.mxu0 0.0
  %2274 = vmatpush1.msra.mxu0 %v997
  %2275 = vmatprep.subr.mxu0 0.0
  %2276 = vmatpush1.msra.mxu0 0.0
  %2277 = vmatprep.subr.mxu0 0.0
  %2278 = vmatpush1.msra.mxu0 0.0
  %2279 = vmatprep.subr.mxu0 0.0
  %2280 = vmatpush1.msra.mxu0 0.0
  %2281 = vmatprep.subr.mxu0 0.0
  %2282 = vmatpush1.msra.mxu0 0.0
  %2283 = vmatprep.subr.mxu0 0.0
  %2284 = vmatpush1.msra.mxu0 0.0
  %2285 = vmatprep.subr.mxu0 0.0
  %2286 = vmatpush1.msra.mxu0 0.0
  %2287 = vmatprep.subr.mxu0 0.0
  %2288 = vmatpush1.msra.mxu0 0.0
  %2289 = vmatprep.subr.mxu0 0.0
  %2290 = vmatpush1.msra.mxu0 0.0
  %2291 = vmatprep.subr.mxu0 0.0
  %2292 = vmatpush1.msra.mxu0 0.0
  %2293 = vmatprep.subr.mxu0 0.0
  %2294 = vmatpush1.msra.mxu0 0.0
  %2295 = vmatprep.subr.mxu0 0.0
  %2296 = vmatpush1.msra.mxu0 0.0
  %2297 = vmatprep.subr.mxu0 0.0
  %2298 = vmatpush1.msra.mxu0 0.0
  %2299 = vmatprep.subr.mxu0 0.0
  %2300 = vmatpush1.msra.mxu0 0.0
  %2301 = vmatprep.subr.mxu0 0.0
  %2302 = vmatpush1.msra.mxu0 0.0
  %2303 = vmatprep.subr.mxu0 0.0
  %2304 = vmatpush1.msra.mxu0 0.0
  %2305 = vmatprep.subr.mxu0 0.0
  %2306 = vmatpush1.msra.mxu0 0.0
  %2307 = vmatprep.subr.mxu0 0.0
  %2308 = vmatpush1.msra.mxu0 0.0
  %2309 = vmatprep.subr.mxu0 0.0
  %2310 = vmatpush1.msra.mxu0 0.0
  %2311 = vmatprep.subr.mxu0 0.0
  %2312 = vmatpush1.msra.mxu0 0.0
  %2313 = vmatprep.subr.mxu0 0.0
  %2314 = vmatpush1.msra.mxu0 0.0
  %2315 = vmatprep.subr.mxu0 0.0
  %2316 = vmatpush1.msra.mxu0 0.0
  %2317 = vmatprep.subr.mxu0 0.0
  %2318 = vmatpush1.msra.mxu0 0.0
  %2319 = vmatprep.subr.mxu0 0.0
  %2320 = vmatpush1.msra.mxu0 0.0
  %2321 = vmatprep.subr.mxu0 0.0
  %2322 = vmatpush1.msra.mxu0 0.0
  %2323 = vmatprep.subr.mxu0 0.0
  %2324 = vmatpush1.msra.mxu0 0.0
  %2325 = vmatprep.subr.mxu0 0.0
  %2326 = vmatpush1.msra.mxu0 0.0
  %2327 = vmatprep.subr.mxu0 0.0
  %2328 = vmatpush1.msra.mxu0 0.0
  %2329 = vmatprep.subr.mxu0 0.0
  %2330 = vmatpush1.msra.mxu0 0.0
  %2331 = vmatprep.mubr.f32.mxu0 0.0
  %2332 = vmatmul.mubr.f32.gmra.mrb[0].mxu0 %v2265
  %v2333 = vpop.f32.mrb[0].mxu0
  %v2334 = vadd.f32 %v2259, %v2333
  %v2335 = vpop.f32.mrb[0].mxu0
  %2336 = vdwg.mxu0
  %v2337 = vadd.f32 %v2334, %v1141
  %v2338 = vxor.u32 %v2337, 2147483648
  %v2339 = vmul.f32 %v2338, 1.442695
  %v2340 = vpow.pop %v2339
  %v2341 = vadd.f32 %v2340, 1.0
  %v2342 = vrcp.pop %v2341
  %v2343 = vmul.f32 1.0, %v2342
  %v2344 = vtanh.pop %v2337
  %v2345 = vmul.f32 %v2343, %v2180
  %2347 = vrot.lane.b32.xlu0 %v2344, 64
  %v2348 = vpop.permute.xlu0 %2347
  %v2350 = vmul.f32 %v2343, %v2348
  %2352 = vrot.lane.b32.xlu0 %v2350, 32
  %v2353 = vpop.permute.xlu0 %2352
  %v2355 = vadd.f32 %v2345, %v2353
  %v2356 = vtanh.pop %v2355
  %2358 = vrot.lane.b32.xlu0 %v2356, 64
  %v2359 = vpop.permute.xlu0 %2358
  %v2361 = vmul.f32 %v2343, %v2359
  %v2362 = vlaneseq
  %v2363 = vshrl.u32 %v2362, 7
  %v2364 = vsub.s32 0, %v2363
  %v2365 = vrot.slane %v23, %v2364
  %2367 = vrot.lane.b32.xlu0 %v2361, 32
  %v2368 = vpop.permute.xlu0 %2367
  %v2369 = vsel %vm178, %v2368, 0
  %2371 = vmatprep.subr.mxu0 0.0
  %2372 = vmatpush1.msra.mxu0 %v19
  %2373 = vmatprep.subr.mxu0 0.0
  %2374 = vmatpush1.msra.mxu0 %v20
  %2375 = vmatprep.subr.mxu0 0.0
  %2376 = vmatpush1.msra.mxu0 %v21
  %2377 = vmatprep.subr.mxu0 0.0
  %2378 = vmatpush1.msra.mxu0 %v22
  %2379 = vmatprep.subr.mxu0 0.0
  %2380 = vmatpush1.msra.mxu0 0.0
  %2381 = vmatprep.subr.mxu0 0.0
  %2382 = vmatpush1.msra.mxu0 0.0
  %2383 = vmatprep.subr.mxu0 0.0
  %2384 = vmatpush1.msra.mxu0 0.0
  %2385 = vmatprep.subr.mxu0 0.0
  %2386 = vmatpush1.msra.mxu0 0.0
  %2387 = vmatprep.subr.mxu0 0.0
  %2388 = vmatpush1.msra.mxu0 0.0
  %2389 = vmatprep.subr.mxu0 0.0
  %2390 = vmatpush1.msra.mxu0 0.0
  %2391 = vmatprep.subr.mxu0 0.0
  %2392 = vmatpush1.msra.mxu0 0.0
  %2393 = vmatprep.subr.mxu0 0.0
  %2394 = vmatpush1.msra.mxu0 0.0
  %2395 = vmatprep.subr.mxu0 0.0
  %2396 = vmatpush1.msra.mxu0 0.0
  %2397 = vmatprep.subr.mxu0 0.0
  %2398 = vmatpush1.msra.mxu0 0.0
  %2399 = vmatprep.subr.mxu0 0.0
  %2400 = vmatpush1.msra.mxu0 0.0
  %2401 = vmatprep.subr.mxu0 0.0
  %2402 = vmatpush1.msra.mxu0 0.0
  %2403 = vmatprep.subr.mxu0 0.0
  %2404 = vmatpush1.msra.mxu0 0.0
  %2405 = vmatprep.subr.mxu0 0.0
  %2406 = vmatpush1.msra.mxu0 0.0
  %2407 = vmatprep.subr.mxu0 0.0
  %2408 = vmatpush1.msra.mxu0 0.0
  %2409 = vmatprep.subr.mxu0 0.0
  %2410 = vmatpush1.msra.mxu0 0.0
  %2411 = vmatprep.subr.mxu0 0.0
  %2412 = vmatpush1.msra.mxu0 0.0
  %2413 = vmatprep.subr.mxu0 0.0
  %2414 = vmatpush1.msra.mxu0 0.0
  %2415 = vmatprep.subr.mxu0 0.0
  %2416 = vmatpush1.msra.mxu0 0.0
  %2417 = vmatprep.subr.mxu0 0.0
  %2418 = vmatpush1.msra.mxu0 0.0
  %2419 = vmatprep.subr.mxu0 0.0
  %2420 = vmatpush1.msra.mxu0 0.0
  %2421 = vmatprep.subr.mxu0 0.0
  %2422 = vmatpush1.msra.mxu0 0.0
  %2423 = vmatprep.subr.mxu0 0.0
  %2424 = vmatpush1.msra.mxu0 0.0
  %2425 = vmatprep.subr.mxu0 0.0
  %2426 = vmatpush1.msra.mxu0 0.0
  %2427 = vmatprep.subr.mxu0 0.0
  %2428 = vmatpush1.msra.mxu0 0.0
  %2429 = vmatprep.subr.mxu0 0.0
  %2430 = vmatpush1.msra.mxu0 0.0
  %2431 = vmatprep.subr.mxu0 0.0
  %2432 = vmatpush1.msra.mxu0 0.0
  %2433 = vmatprep.subr.mxu0 0.0
  %2434 = vmatpush1.msra.mxu0 0.0
  %2435 = vmatprep.mubr.f32.mxu0 0.0
  %2436 = vmatmul.mubr.f32.gmra.mrb[0].mxu0 %v2369
  %v2437 = vpop.f32.mrb[0].mxu0
  %v2438 = vadd.f32 %v2365, %v2437
  %v2439 = vpop.f32.mrb[0].mxu0
  %2440 = vdwg.mxu0
  %v2441 = vmul.f32 %v2438, 2.0
  %v2442 = vadd.f32 %v2441, 0.5
  %vm2443 = vcmask 1024
  %2444 = vst.msk [vmem:[%s3] sm:$0x3] %vm2443, %v2442
  // Predicated region
  $region14: #{decoder_forward.1} parent=0 // pred_check
    _
  $region15: #{decoder_forward.1} parent=0 // pred_check_branch
    %2446 = sbr.rel (0) target = $region17
  $region16: #{decoder_forward.1} parent=0 // pred_region
    _
  $region17: #{decoder_forward.1} parent=0 // pred_fallthru
    _
  // Predicated region
  $region18: #{decoder_forward.1} parent=0 // pred_check
    _
  $region19: #{decoder_forward.1} parent=0 // pred_check_branch
    %2448 = sbr.rel (0) target = $region21
  $region20: #{decoder_forward.1} parent=0 // pred_region
    _
  $region21: #{decoder_forward.1} parent=0 // pred_fallthru
    _

</llo_original>
